<compile_context>
chip_gen: v5e
topology: v5e:2x2
jax: 0.10.0
libtpu: 0.0.40
codegen_flags: <defaults>
</compile_context>

<pallas_src>
import jax
import jax.numpy as jnp
from jax import lax
from jax.experimental import pallas as pl
from jax.experimental.pallas import tpu as pltpu
import numpy as np

IN_CH = 6
WINDOW = 30
OUT_DIM = 2
C1 = 16
C2 = 32
K = 3
EPS = 1e-5

D_IN = IN_CH * WINDOW    # 180
D1 = C1 * WINDOW         # 480
D2 = C2 * WINDOW         # 960
OUT_PAD = 8              # tiny lane pad; block last dim == full array last dim
MAX_TB = 512             # batch-tile cap; keeps per-step VMEM well under default limits


def cnn_kernel(x_ref, w1_ref, s1_ref, t1_ref, w2_ref, s2_ref, t2_ref,
               wfc_ref, bfc_ref, out_ref):
    """One TB-element batch tile per grid step, fully lane-dense.

    x_ref  : (TB, 180)   contiguous NCW flatten of the input tile
    w1_ref : (180, 480)  conv1 as a banded dense matrix
    s1/t1  : (1, 480)    conv1 bias + eval-mode BN folded, repeated over positions
    w2_ref : (480, 960)  conv2 as a banded dense matrix
    s2/t2  : (1, 960)
    wfc_ref: (960, 8)    fc weight transposed, zero-padded OUT_DIM->OUT_PAD
    bfc_ref: (1, 8)
    out_ref: (TB, 8)
    """
    x = x_ref[...]                                                    # (TB, 180)

    # conv1 -> folded BN -> ReLU   (single MXU matmul, M=TB, K=180, N=480)
    y1 = jnp.dot(x, w1_ref[...], preferred_element_type=jnp.float32)
    y1 = jnp.maximum(y1 * s1_ref[...] + t1_ref[...], 0.0)            # (TB, 480)

    # conv2 -> folded BN -> ReLU   (single MXU matmul, K=480, N=960)
    y2 = jnp.dot(y1, w2_ref[...], preferred_element_type=jnp.float32)
    y2 = jnp.maximum(y2 * s2_ref[...] + t2_ref[...], 0.0)            # (TB, 960)

    # Fully connected: single contraction over all 960 features.
    out_ref[...] = (jnp.dot(y2, wfc_ref[...], preferred_element_type=jnp.float32)
                    + bfc_ref[...])


def _pick_tb(B):
    """Batch tile: multiple of 8; >=2 tiles for B>8 so v7x's 2 TCs both get work."""
    if B <= 8:
        return 8
    half = (B + 1) // 2
    tb = ((half + 7) // 8) * 8
    return min(tb, MAX_TB)


def cnn_forward(x_ncw, kparams):
    """x_ncw: (B, IN_CH, WINDOW) float32, PyTorch NCW layout."""
    (w1d, s1, t1, w2d, s2, t2, wfc, bfc) = kparams
    B = x_ncw.shape[0]

    TB = _pick_tb(B)
    B_pad = ((B + TB - 1) // TB) * TB
    num_tiles = B_pad // TB

    # Contiguous flatten (matches torch memory layout); zero-pad batch to tile multiple.
    x_flat = x_ncw.reshape(B, D_IN).astype(jnp.float32)
    if B_pad != B:
        x_flat = jnp.pad(x_flat, ((0, B_pad - B), (0, 0)))

    def full(a):
        return pl.BlockSpec(a.shape, lambda i: (0,) * a.ndim)

    out = pl.pallas_call(
        cnn_kernel,
        out_shape=jax.ShapeDtypeStruct((B_pad, OUT_PAD), jnp.float32),
        grid_spec=pltpu.PrefetchScalarGridSpec(
            num_scalar_prefetch=0,
            grid=(num_tiles,),
            in_specs=[
                pl.BlockSpec((TB, D_IN), lambda i: (i, 0)),
                full(w1d), full(s1), full(t1),
                full(w2d), full(s2), full(t2),
                full(wfc), full(bfc),
            ],
            out_specs=pl.BlockSpec((TB, OUT_PAD), lambda i: (i, 0)),
        ),
        compiler_params=pltpu.CompilerParams(
            dimension_semantics=("parallel",)),
    )(x_flat, w1d, s1, t1, w2d, s2, t2, wfc, bfc)

    return out[:B, :OUT_DIM]


def conv_band_matrix(w_oik, win):
    """Fold a kernel_size=K, padding=(K-1)//2 Conv1d into a dense (I*win, O*win) matrix.

    dense[i*win + m, o*win + l] = w[o, i, m - l + pad]  if 0 <= m-l+pad < K else 0,
    so that  y_flat = x_flat @ dense  with x_flat/y_flat in torch (channel, position)
    flatten order reproduces the convolution.
    """
    O, I, Kk = w_oik.shape
    pad = (Kk - 1) // 2
    m = jnp.arange(win)[:, None]                 # source position
    l = jnp.arange(win)[None, :]                 # output position
    k = m - l + pad                              # (win, win)
    valid = (k >= 0) & (k < Kk)
    k_c = jnp.clip(k, 0, Kk - 1)
    taps = w_oik[:, :, k_c] * valid[None, None, :, :].astype(w_oik.dtype)  # (O,I,win,win)
    dense = jnp.transpose(taps, (1, 2, 0, 3)).reshape(I * win, O * win)
    return dense


def init_params(key):
    """Deterministic synthetic parameters matching the PyTorch module shapes."""
    ks = jax.random.split(key, 14)
    w1_oik = jax.random.normal(ks[0], (C1, IN_CH, K), jnp.float32) * 0.2    # conv1.weight
    b1v = jax.random.normal(ks[1], (C1,), jnp.float32) * 0.1                # conv1.bias
    g1 = jax.random.uniform(ks[2], (C1,), jnp.float32, 0.5, 1.5)            # bn1.weight
    be1 = jax.random.normal(ks[3], (C1,), jnp.float32) * 0.1                # bn1.bias
    m1 = jax.random.normal(ks[4], (C1,), jnp.float32) * 0.1                 # bn1.running_mean
    v1 = jax.random.uniform(ks[5], (C1,), jnp.float32, 0.5, 1.5)            # bn1.running_var

    w2_oik = jax.random.normal(ks[6], (C2, C1, K), jnp.float32) * 0.1       # conv2.weight
    b2v = jax.random.normal(ks[7], (C2,), jnp.float32) * 0.1                # conv2.bias
    g2 = jax.random.uniform(ks[8], (C2,), jnp.float32, 0.5, 1.5)
    be2 = jax.random.normal(ks[9], (C2,), jnp.float32) * 0.1
    m2 = jax.random.normal(ks[10], (C2,), jnp.float32) * 0.1
    v2 = jax.random.uniform(ks[11], (C2,), jnp.float32, 0.5, 1.5)

    wfc_raw = jax.random.normal(ks[12], (OUT_DIM, C2 * WINDOW), jnp.float32) * 0.05  # fc.weight
    bfc_v = jax.random.normal(ks[13], (OUT_DIM,), jnp.float32) * 0.1                 # fc.bias
    return (w1_oik, b1v, g1, be1, m1, v1,
            w2_oik, b2v, g2, be2, m2, v2, wfc_raw, bfc_v)


def to_kernel_params(raw):
    (w1_oik, b1v, g1, be1, m1, v1,
     w2_oik, b2v, g2, be2, m2, v2, wfc_raw, bfc_v) = raw

    # Convs as banded dense matrices (computed once, outside the kernel).
    w1d = conv_band_matrix(w1_oik, WINDOW)                      # (180, 480)
    w2d = conv_band_matrix(w2_oik, WINDOW)                      # (480, 960)

    # Fold conv bias + eval-mode BatchNorm into per-channel scale/shift:
    #   bn(conv(x) + b) = conv(x) * s + ((b - mean) * s + beta)
    s1 = g1 / jnp.sqrt(v1 + EPS)
    t1 = (b1v - m1) * s1 + be1
    s2 = g2 / jnp.sqrt(v2 + EPS)
    t2 = (b2v - m2) * s2 + be2
    # Repeat each channel value over the WINDOW positions (channel-major flatten order).
    s1f = jnp.repeat(s1, WINDOW).reshape(1, D1)
    t1f = jnp.repeat(t1, WINDOW).reshape(1, D1)
    s2f = jnp.repeat(s2, WINDOW).reshape(1, D2)
    t2f = jnp.repeat(t2, WINDOW).reshape(1, D2)

    # fc.weight columns are already in (channel, position) flatten order == our layout.
    wfc = jnp.pad(wfc_raw.T, ((0, 0), (0, OUT_PAD - OUT_DIM)))  # (960, 8)
    bfc = jnp.pad(bfc_v, (0, OUT_PAD - OUT_DIM)).reshape(1, OUT_PAD)
    return (w1d, s1f, t1f, w2d, s2f, t2f, wfc, bfc)


def reference_forward(x, raw):
    """Pure-JAX reference mirroring the PyTorch forward (eval-mode BN)."""
    (w1_oik, b1v, g1, be1, m1, v1,
     w2_oik, b2v, g2, be2, m2, v2, wfc_raw, bfc_v) = raw

    def bn(y, g, be, m, v):
        return (y - m[None, :, None]) / jnp.sqrt(v[None, :, None] + EPS) \
            * g[None, :, None] + be[None, :, None]

    y = lax.conv_general_dilated(x, w1_oik, (1,), [(1, 1)],
                                 dimension_numbers=('NCH', 'OIH', 'NCH'),
                                 precision=lax.Precision.HIGHEST)
    y = jnp.maximum(bn(y + b1v[None, :, None], g1, be1, m1, v1), 0.0)
    y = lax.conv_general_dilated(y, w2_oik, (1,), [(1, 1)],
                                 dimension_numbers=('NCH', 'OIH', 'NCH'),
                                 precision=lax.Precision.HIGHEST)
    y = jnp.maximum(bn(y + b2v[None, :, None], g2, be2, m2, v2), 0.0)
    flat = y.reshape(y.shape[0], -1)                      # torch x.view(B, -1)
    return jnp.dot(flat, wfc_raw.T, precision=lax.Precision.HIGHEST) + bfc_v


if __name__ == "__main__":
    key = jax.random.PRNGKey(0)
    k_x, k_x2, k_p = jax.random.split(key, 3)

    raw = init_params(k_p)
    kparams = to_kernel_params(raw)

    # Small single-tile case (B=4 -> TB=8, grid=(1,)).
    B = 4
    x = jax.random.normal(k_x, (B, IN_CH, WINDOW), jnp.float32)   # NCW, like PyTorch
    out = jax.block_until_ready(cnn_forward(x, kparams))
    ref = jax.block_until_ready(reference_forward(x, raw))
    np.testing.assert_allclose(np.asarray(out), np.asarray(ref),
                               rtol=2e-3, atol=1e-3)
    assert out.shape == (B, OUT_DIM)

    # Multi-tile case exercising batch padding and a 2-step parallel grid (B=20 -> TB=16).
    B2 = 20
    x2 = jax.random.normal(k_x2, (B2, IN_CH, WINDOW), jnp.float32)
    out2 = jax.block_until_ready(cnn_forward(x2, kparams))
    ref2 = jax.block_until_ready(reference_forward(x2, raw))
    np.testing.assert_allclose(np.asarray(out2), np.asarray(ref2),
                               rtol=2e-3, atol=1e-3)
    assert out2.shape == (B2, OUT_DIM)

    print("KERNEL_OK")
</pallas_src>

<mosaic_0001>
module attributes {stable_mosaic.version = 11 : i64} {
  func.func @cnn_kernel(%arg0: i32, %arg1: memref<8x180xf32, #tpu.memory_space<vmem>>, %arg2: memref<180x480xf32, #tpu.memory_space<vmem>>, %arg3: memref<1x480xf32, #tpu.memory_space<vmem>>, %arg4: memref<1x480xf32, #tpu.memory_space<vmem>>, %arg5: memref<480x960xf32, #tpu.memory_space<vmem>>, %arg6: memref<1x960xf32, #tpu.memory_space<vmem>>, %arg7: memref<1x960xf32, #tpu.memory_space<vmem>>, %arg8: memref<960x8xf32, #tpu.memory_space<vmem>>, %arg9: memref<1x8xf32, #tpu.memory_space<vmem>>, %arg10: memref<8x8xf32, #tpu.memory_space<vmem>>) attributes {dimension_semantics = [#tpu.dimension_semantics<parallel>], iteration_bounds = array<i64: 1>, scalar_prefetch = 0 : i64, scratch_operands = 0 : i64, tpu.core_type = #tpu.core_type<tc>, window_params = [{transform_indices = @transform_0, window_bounds = array<i64: 8, 180>}, {pipeline_mode = #tpu.pipeline_mode<synchronous>, transform_indices = @transform_1, window_bounds = array<i64: 180, 480>}, {pipeline_mode = #tpu.pipeline_mode<synchronous>, transform_indices = @transform_2, window_bounds = array<i64: 1, 480>}, {pipeline_mode = #tpu.pipeline_mode<synchronous>, transform_indices = @transform_3, window_bounds = array<i64: 1, 480>}, {pipeline_mode = #tpu.pipeline_mode<synchronous>, transform_indices = @transform_4, window_bounds = array<i64: 480, 960>}, {pipeline_mode = #tpu.pipeline_mode<synchronous>, transform_indices = @transform_5, window_bounds = array<i64: 1, 960>}, {pipeline_mode = #tpu.pipeline_mode<synchronous>, transform_indices = @transform_6, window_bounds = array<i64: 1, 960>}, {pipeline_mode = #tpu.pipeline_mode<synchronous>, transform_indices = @transform_7, window_bounds = array<i64: 960, 8>}, {pipeline_mode = #tpu.pipeline_mode<synchronous>, transform_indices = @transform_8, window_bounds = array<i64: 1, 8>}, {transform_indices = @transform_9, window_bounds = array<i64: 8, 8>}]} {
    %c0 = arith.constant 0 : index
    %c0_0 = arith.constant 0 : index
    %0 = vector.load %arg1[%c0, %c0_0] : memref<8x180xf32, #tpu.memory_space<vmem>>, vector<8x180xf32>
    %c0_1 = arith.constant 0 : index
    %c0_2 = arith.constant 0 : index
    %1 = vector.load %arg2[%c0_1, %c0_2] : memref<180x480xf32, #tpu.memory_space<vmem>>, vector<180x480xf32>
    %cst = arith.constant dense<0.000000e+00> : vector<8x480xf32>
    %2 = tpu.matmul %0, %1, %cst {dimension_numbers = #tpu.dot_dimension_numbers<[1], [0], [0], [1], [0, 0, 1, 1], [], []>} : vector<8x180xf32>, vector<180x480xf32>, vector<8x480xf32> -> vector<8x480xf32>
    %c0_3 = arith.constant 0 : index
    %c0_4 = arith.constant 0 : index
    %3 = vector.load %arg3[%c0_3, %c0_4] : memref<1x480xf32, #tpu.memory_space<vmem>>, vector<1x480xf32>
    %4 = vector.broadcast %3 : vector<1x480xf32> to vector<8x480xf32>
    %5 = arith.mulf %2, %4 : vector<8x480xf32>
    %c0_5 = arith.constant 0 : index
    %c0_6 = arith.constant 0 : index
    %6 = vector.load %arg4[%c0_5, %c0_6] : memref<1x480xf32, #tpu.memory_space<vmem>>, vector<1x480xf32>
    %7 = vector.broadcast %6 : vector<1x480xf32> to vector<8x480xf32>
    %8 = arith.addf %5, %7 : vector<8x480xf32>
    %cst_7 = arith.constant 0.000000e+00 : f32
    %9 = vector.broadcast %cst_7 : f32 to vector<8x480xf32>
    %10 = arith.maximumf %8, %9 : vector<8x480xf32>
    %c0_8 = arith.constant 0 : index
    %c0_9 = arith.constant 0 : index
    %11 = vector.load %arg5[%c0_8, %c0_9] : memref<480x960xf32, #tpu.memory_space<vmem>>, vector<480x960xf32>
    %cst_10 = arith.constant dense<0.000000e+00> : vector<8x960xf32>
    %12 = tpu.matmul %10, %11, %cst_10 {dimension_numbers = #tpu.dot_dimension_numbers<[1], [0], [0], [1], [0, 0, 1, 1], [], []>} : vector<8x480xf32>, vector<480x960xf32>, vector<8x960xf32> -> vector<8x960xf32>
    %c0_11 = arith.constant 0 : index
    %c0_12 = arith.constant 0 : index
    %13 = vector.load %arg6[%c0_11, %c0_12] : memref<1x960xf32, #tpu.memory_space<vmem>>, vector<1x960xf32>
    %14 = vector.broadcast %13 : vector<1x960xf32> to vector<8x960xf32>
    %15 = arith.mulf %12, %14 : vector<8x960xf32>
    %c0_13 = arith.constant 0 : index
    %c0_14 = arith.constant 0 : index
    %16 = vector.load %arg7[%c0_13, %c0_14] : memref<1x960xf32, #tpu.memory_space<vmem>>, vector<1x960xf32>
    %17 = vector.broadcast %16 : vector<1x960xf32> to vector<8x960xf32>
    %18 = arith.addf %15, %17 : vector<8x960xf32>
    %cst_15 = arith.constant 0.000000e+00 : f32
    %19 = vector.broadcast %cst_15 : f32 to vector<8x960xf32>
    %20 = arith.maximumf %18, %19 : vector<8x960xf32>
    %c0_16 = arith.constant 0 : index
    %c0_17 = arith.constant 0 : index
    %21 = vector.load %arg8[%c0_16, %c0_17] : memref<960x8xf32, #tpu.memory_space<vmem>>, vector<960x8xf32>
    %cst_18 = arith.constant dense<0.000000e+00> : vector<8x8xf32>
    %22 = tpu.matmul %20, %21, %cst_18 {dimension_numbers = #tpu.dot_dimension_numbers<[1], [0], [0], [1], [0, 0, 1, 1], [], []>} : vector<8x960xf32>, vector<960x8xf32>, vector<8x8xf32> -> vector<8x8xf32>
    %c0_19 = arith.constant 0 : index
    %c0_20 = arith.constant 0 : index
    %23 = vector.load %arg9[%c0_19, %c0_20] : memref<1x8xf32, #tpu.memory_space<vmem>>, vector<1x8xf32>
    %24 = vector.broadcast %23 : vector<1x8xf32> to vector<8x8xf32>
    %25 = arith.addf %22, %24 : vector<8x8xf32>
    %c0_21 = arith.constant 0 : index
    %c0_22 = arith.constant 0 : index
    %26 = vector.load %arg10[%c0_21, %c0_22] : memref<8x8xf32, #tpu.memory_space<vmem>>, vector<8x8xf32>
    tpu.vector_store %arg10[%c0_21, %c0_22], %25 {strides = array<i32>} : memref<8x8xf32, #tpu.memory_space<vmem>>, vector<8x8xf32>,
    return
  }
  func.func @transform_0(%arg0: i32) -> (i32, i32) {
    %c0_i32 = arith.constant 0 : i32
    %c0_i32_0 = arith.constant 0 : i32
    return %arg0, %c0_i32 : i32, i32
  }
  func.func @transform_1(%arg0: i32) -> (i32, i32) {
    %c0_i32 = arith.constant 0 : i32
    %c0_i32_0 = arith.constant 0 : i32
    %c0_i32_1 = arith.constant 0 : i32
    return %c0_i32, %c0_i32_0 : i32, i32
  }
  func.func @transform_2(%arg0: i32) -> (i32, i32) {
    %c0_i32 = arith.constant 0 : i32
    %c0_i32_0 = arith.constant 0 : i32
    %c0_i32_1 = arith.constant 0 : i32
    return %c0_i32, %c0_i32_0 : i32, i32
  }
  func.func @transform_3(%arg0: i32) -> (i32, i32) {
    %c0_i32 = arith.constant 0 : i32
    %c0_i32_0 = arith.constant 0 : i32
    %c0_i32_1 = arith.constant 0 : i32
    return %c0_i32, %c0_i32_0 : i32, i32
  }
  func.func @transform_4(%arg0: i32) -> (i32, i32) {
    %c0_i32 = arith.constant 0 : i32
    %c0_i32_0 = arith.constant 0 : i32
    %c0_i32_1 = arith.constant 0 : i32
    return %c0_i32, %c0_i32_0 : i32, i32
  }
  func.func @transform_5(%arg0: i32) -> (i32, i32) {
    %c0_i32 = arith.constant 0 : i32
    %c0_i32_0 = arith.constant 0 : i32
    %c0_i32_1 = arith.constant 0 : i32
    return %c0_i32, %c0_i32_0 : i32, i32
  }
  func.func @transform_6(%arg0: i32) -> (i32, i32) {
    %c0_i32 = arith.constant 0 : i32
    %c0_i32_0 = arith.constant 0 : i32
    %c0_i32_1 = arith.constant 0 : i32
    return %c0_i32, %c0_i32_0 : i32, i32
  }
  func.func @transform_7(%arg0: i32) -> (i32, i32) {
    %c0_i32 = arith.constant 0 : i32
    %c0_i32_0 = arith.constant 0 : i32
    %c0_i32_1 = arith.constant 0 : i32
    return %c0_i32, %c0_i32_0 : i32, i32
  }
  func.func @transform_8(%arg0: i32) -> (i32, i32) {
    %c0_i32 = arith.constant 0 : i32
    %c0_i32_0 = arith.constant 0 : i32
    %c0_i32_1 = arith.constant 0 : i32
    return %c0_i32, %c0_i32_0 : i32, i32
  }
  func.func @transform_9(%arg0: i32) -> (i32, i32) {
    %c0_i32 = arith.constant 0 : i32
    %c0_i32_0 = arith.constant 0 : i32
    return %arg0, %c0_i32 : i32, i32
  }
}

</mosaic_0001>

<llo_original>
// kernel: tpu_custom_call.1
$region0: #{tpu_custom_call.1}
  #allocation0 [shape = 'u32[]', space=smem, size = 0x4, offset = 0x4, fixed_abs, tag = 'smem constant byte address 0x4 - core index']
  #allocation1 [shape = 'u32[72,128]{1,0:T(1,128)}', space=vmem, size = 0x9000, scoped, tag = 'internal scratch']
  %s0 = inlined_call_operand.hbm [shape: f32[8,180], index: 0, kind: input, shape index: {}]
  %s1 = inlined_call_operand.hbm [shape: f32[180,480], index: 1, kind: input, shape index: {}]
  %s2 = inlined_call_operand.hbm [shape: f32[1,480], index: 2, kind: input, shape index: {}]
  %s3 = inlined_call_operand.hbm [shape: f32[1,480], index: 3, kind: input, shape index: {}]
  %s4 = inlined_call_operand.hbm [shape: f32[480,960], index: 4, kind: input, shape index: {}]
  %s5 = inlined_call_operand.hbm [shape: f32[1,960], index: 5, kind: input, shape index: {}]
  %s6 = inlined_call_operand.hbm [shape: f32[1,960], index: 6, kind: input, shape index: {}]
  %s7 = inlined_call_operand.vmem [shape: f32[960,8], index: 7, kind: input, shape index: {}]
  %s8 = inlined_call_operand.hbm [shape: f32[1,8], index: 8, kind: input, shape index: {}]
  %s9 = inlined_call_operand.hbm [shape: f32[8,8], index: 9, kind: output, shape index: {}]
  %s10 = sld [smem:[#allocation0]]
  $region78: #{tpu_custom_call.1} parent=0
    _
  %s12 = ssub.s32 1, %s10
  %s13 = scalar_select 0, %s12, %s10
  $region1: #{tpu_custom_call.1} parent=0
    #allocation2 [shape = 'u8[8192]{0}', space=vmem, size = 0x2000, scoped, tag = 'input window, operand 0, single buffered']
    #allocation3 [shape = 's32[1]{0}', space=sflag, size = 0x4, scoped, tag = 'scoped memory for tpu_custom_call.1']
    #allocation4 [shape = 's32[1]{0}', space=sflag, size = 0x4, scoped, tag = 'scoped memory for tpu_custom_call.1']
    #allocation5 [shape = 'u8[376832]{0}', space=vmem, size = 0x5c000, scoped, tag = 'input window, operand 1, single buffered']
    #allocation6 [shape = 's32[1]{0}', space=sflag, size = 0x4, scoped, tag = 'scoped memory for tpu_custom_call.1']
    #allocation7 [shape = 'u8[2048]{0}', space=vmem, size = 0x800, scoped, tag = 'input window, operand 2, single buffered']
    #allocation8 [shape = 'u8[2048]{0}', space=vmem, size = 0x800, scoped, tag = 'input window, operand 3, single buffered']
    #allocation9 [shape = 's32[1]{0}', space=sflag, size = 0x4, scoped, tag = 'scoped memory for tpu_custom_call.1']
    #allocation10 [shape = 'u8[1966080]{0}', space=vmem, size = 0x1e0000, scoped, tag = 'input window, operand 4, single buffered']
    #allocation11 [shape = 'u8[4096]{0}', space=vmem, size = 0x1000, scoped, tag = 'input window, operand 5, single buffered']
    #allocation12 [shape = 's32[1]{0}', space=sflag, size = 0x4, scoped, tag = 'scoped memory for tpu_custom_call.1']
    #allocation13 [shape = 'u8[4096]{0}', space=vmem, size = 0x1000, scoped, tag = 'input window, operand 6, single buffered']
    #allocation14 [shape = 'u8[512]{0}', space=vmem, size = 0x400, scoped, tag = 'input window, operand 8, single buffered']
    #allocation15 [shape = 's32[1]{0}', space=sflag, size = 0x4, scoped, tag = 'scoped memory for tpu_custom_call.1']
    #allocation16 [shape = 'u8[4096]{0}', space=vmem, size = 0x1000, scoped, tag = 'output window, operand 0, single buffered']
    %14 = vsyncpa [#allocation3], 0
    %15 = vsyncpa [#allocation6], 0
    %16 = vsyncpa [#allocation9], 0
    %17 = vsyncpa [#allocation12], 0
    %18 = vsyncpa [#allocation15], 0
    %19 = vsyncpa [#allocation4], 0
    // Predicated region
    $region2: #{tpu_custom_call.1} parent=1 // pred_check
      _
    $region3: #{tpu_custom_call.1} parent=1 // pred_check_branch
      %21 = sbr.rel (0) target = $region5
    $region4: #{tpu_custom_call.1} parent=1 // pred_region
      %23 = vsyncadd [#allocation3], 0
      %s25 = sshll.u32 %s0, 4
      %s26 = int_to_ptr.hbm [resolvable:$true] %s25
      %s27 = sshll.u32 [#allocation2], 4
      %s28 = int_to_ptr.vmem [resolvable:$true] %s27
      %30 = dma.hbm_to_vmem [thread:$0]  %s26, 256, %s28, [#allocation3]
    $region5: #{tpu_custom_call.1} parent=1 // pred_fallthru
      _
    // Predicated region
    $region6: #{tpu_custom_call.1} parent=1 // pred_check
      _
    $region7: #{tpu_custom_call.1} parent=1 // pred_check_branch
      %32 = sbr.rel (0) target = $region9
    $region8: #{tpu_custom_call.1} parent=1 // pred_region
      %34 = vsyncadd [#allocation6], 0
      %s35 = sshll.u32 %s1, 4
      %s36 = int_to_ptr.hbm [resolvable:$true] %s35
      %s37 = sshll.u32 [#allocation5], 4
      %s38 = int_to_ptr.vmem [resolvable:$true] %s37
      %43 = dma.hbm_to_vmem [thread:$0]  %s36, 11776, %s38, [#allocation6], 512, 512, 32
    $region9: #{tpu_custom_call.1} parent=1 // pred_fallthru
      _
    // Predicated region
    $region10: #{tpu_custom_call.1} parent=1 // pred_check
      _
    $region11: #{tpu_custom_call.1} parent=1 // pred_check_branch
      %45 = sbr.rel (0) target = $region13
    $region12: #{tpu_custom_call.1} parent=1 // pred_region
      %47 = vsyncadd [#allocation6], 0
      %s49 = sshll.u32 %s2, 4
      %s50 = int_to_ptr.hbm [resolvable:$true] %s49
      %s51 = sshll.u32 [#allocation7], 4
      %s52 = int_to_ptr.vmem [resolvable:$true] %s51
      %54 = dma.hbm_to_vmem [thread:$0]  %s50, 64, %s52, [#allocation6]
    $region13: #{tpu_custom_call.1} parent=1 // pred_fallthru
      _
    // Predicated region
    $region14: #{tpu_custom_call.1} parent=1 // pred_check
      _
    $region15: #{tpu_custom_call.1} parent=1 // pred_check_branch
      %56 = sbr.rel (0) target = $region17
    $region16: #{tpu_custom_call.1} parent=1 // pred_region
      %58 = vsyncadd [#allocation9], 0
      %s60 = sshll.u32 %s3, 4
      %s61 = int_to_ptr.hbm [resolvable:$true] %s60
      %s62 = sshll.u32 [#allocation8], 4
      %s63 = int_to_ptr.vmem [resolvable:$true] %s62
      %65 = dma.hbm_to_vmem [thread:$0]  %s61, 64, %s63, [#allocation9]
    $region17: #{tpu_custom_call.1} parent=1 // pred_fallthru
      _
    // Predicated region
    $region18: #{tpu_custom_call.1} parent=1 // pred_check
      _
    $region19: #{tpu_custom_call.1} parent=1 // pred_check_branch
      %67 = sbr.rel (0) target = $region21
    $region20: #{tpu_custom_call.1} parent=1 // pred_region
      %69 = vsyncadd [#allocation9], 0
      %s70 = sshll.u32 %s4, 4
      %s71 = int_to_ptr.hbm [resolvable:$true] %s70
      %s72 = sshll.u32 [#allocation10], 4
      %s73 = int_to_ptr.vmem [resolvable:$true] %s72
      %78 = dma.hbm_to_vmem [thread:$0]  %s71, 61440, %s73, [#allocation9], 1024, 1024, 64
    $region21: #{tpu_custom_call.1} parent=1 // pred_fallthru
      _
    // Predicated region
    $region22: #{tpu_custom_call.1} parent=1 // pred_check
      _
    $region23: #{tpu_custom_call.1} parent=1 // pred_check_branch
      %80 = sbr.rel (0) target = $region25
    $region24: #{tpu_custom_call.1} parent=1 // pred_region
      %82 = vsyncadd [#allocation12], 0
      %s84 = sshll.u32 %s5, 4
      %s85 = int_to_ptr.hbm [resolvable:$true] %s84
      %s86 = sshll.u32 [#allocation11], 4
      %s87 = int_to_ptr.vmem [resolvable:$true] %s86
      %89 = dma.hbm_to_vmem [thread:$0]  %s85, 128, %s87, [#allocation12]
    $region25: #{tpu_custom_call.1} parent=1 // pred_fallthru
      _
    // Predicated region
    $region26: #{tpu_custom_call.1} parent=1 // pred_check
      _
    $region27: #{tpu_custom_call.1} parent=1 // pred_check_branch
      %91 = sbr.rel (0) target = $region29
    $region28: #{tpu_custom_call.1} parent=1 // pred_region
      %93 = vsyncadd [#allocation12], 0
      %s95 = sshll.u32 %s6, 4
      %s96 = int_to_ptr.hbm [resolvable:$true] %s95
      %s97 = sshll.u32 [#allocation13], 4
      %s98 = int_to_ptr.vmem [resolvable:$true] %s97
      %100 = dma.hbm_to_vmem [thread:$0]  %s96, 128, %s98, [#allocation12]
    $region29: #{tpu_custom_call.1} parent=1 // pred_fallthru
      _
    // Predicated region
    $region30: #{tpu_custom_call.1} parent=1 // pred_check
      _
    $region31: #{tpu_custom_call.1} parent=1 // pred_check_branch
      %102 = sbr.rel (0) target = $region33
    $region32: #{tpu_custom_call.1} parent=1 // pred_region
      _
    $region33: #{tpu_custom_call.1} parent=1 // pred_fallthru
      _
    // Predicated region
    $region34: #{tpu_custom_call.1} parent=1 // pred_check
      _
    $region35: #{tpu_custom_call.1} parent=1 // pred_check_branch
      %104 = sbr.rel (0) target = $region37
    $region36: #{tpu_custom_call.1} parent=1 // pred_region
      %106 = vsyncadd [#allocation15], 0
      %s108 = sshll.u32 %s8, 4
      %s109 = int_to_ptr.hbm [resolvable:$true] %s108
      %s110 = sshll.u32 [#allocation14], 4
      %s111 = int_to_ptr.vmem [resolvable:$true] %s110
      %113 = dma.hbm_to_vmem [thread:$0]  %s109, 16, %s111, [#allocation15]
    $region37: #{tpu_custom_call.1} parent=1 // pred_fallthru
      _
    // Predicated region
    $region38: #{tpu_custom_call.1} parent=1 // pred_check
      _
    $region39: #{tpu_custom_call.1} parent=1 // pred_check_branch
      %115 = sbr.rel (0) target = $region41
    $region40: #{tpu_custom_call.1} parent=1 // pred_region
      %117 = dma.done [#allocation3], 256
    $region41: #{tpu_custom_call.1} parent=1 // pred_fallthru
      _
    // Predicated region
    $region42: #{tpu_custom_call.1} parent=1 // pred_check
      _
    $region43: #{tpu_custom_call.1} parent=1 // pred_check_branch
      %119 = sbr.rel (0) target = $region45
    $region44: #{tpu_custom_call.1} parent=1 // pred_region
      %121 = dma.done [#allocation6], 11776
    $region45: #{tpu_custom_call.1} parent=1 // pred_fallthru
      _
    // Predicated region
    $region46: #{tpu_custom_call.1} parent=1 // pred_check
      _
    $region47: #{tpu_custom_call.1} parent=1 // pred_check_branch
      %123 = sbr.rel (0) target = $region49
    $region48: #{tpu_custom_call.1} parent=1 // pred_region
      %125 = dma.done [#allocation6], 64
    $region49: #{tpu_custom_call.1} parent=1 // pred_fallthru
      _
    // Predicated region
    $region50: #{tpu_custom_call.1} parent=1 // pred_check
      _
    $region51: #{tpu_custom_call.1} parent=1 // pred_check_branch
      %127 = sbr.rel (0) target = $region53
    $region52: #{tpu_custom_call.1} parent=1 // pred_region
      %129 = dma.done [#allocation9], 64
    $region53: #{tpu_custom_call.1} parent=1 // pred_fallthru
      _
    // Predicated region
    $region54: #{tpu_custom_call.1} parent=1 // pred_check
      _
    $region55: #{tpu_custom_call.1} parent=1 // pred_check_branch
      %131 = sbr.rel (0) target = $region57
    $region56: #{tpu_custom_call.1} parent=1 // pred_region
      %133 = dma.done [#allocation9], 61440
    $region57: #{tpu_custom_call.1} parent=1 // pred_fallthru
      _
    // Predicated region
    $region58: #{tpu_custom_call.1} parent=1 // pred_check
      _
    $region59: #{tpu_custom_call.1} parent=1 // pred_check_branch
      %135 = sbr.rel (0) target = $region61
    $region60: #{tpu_custom_call.1} parent=1 // pred_region
      %137 = dma.done [#allocation12], 128
    $region61: #{tpu_custom_call.1} parent=1 // pred_fallthru
      _
    // Predicated region
    $region62: #{tpu_custom_call.1} parent=1 // pred_check
      _
    $region63: #{tpu_custom_call.1} parent=1 // pred_check_branch
      %139 = sbr.rel (0) target = $region65
    $region64: #{tpu_custom_call.1} parent=1 // pred_region
      %141 = dma.done [#allocation12], 128
    $region65: #{tpu_custom_call.1} parent=1 // pred_fallthru
      _
    // Predicated region
    $region66: #{tpu_custom_call.1} parent=1 // pred_check
      _
    $region67: #{tpu_custom_call.1} parent=1 // pred_check_branch
      %143 = sbr.rel (0) target = $region69
    $region68: #{tpu_custom_call.1} parent=1 // pred_region
      %145 = dma.done [#allocation15], 16
    $region69: #{tpu_custom_call.1} parent=1 // pred_fallthru
      _
    %v146 = vld [vmem:[#allocation2] sm:$0xff]
    %v147 = vld [vmem:[#allocation2 + $0x8] sm:$0xff]
    %v148 = vld [vmem:[#allocation5] sm:$0xff]
    %v149 = vld [vmem:[#allocation5 + $0x8] sm:$0xff]
    %v150 = vld [vmem:[#allocation5 + $0x10] sm:$0xff]
    %v151 = vld [vmem:[#allocation5 + $0x18] sm:$0xff]
    %v152 = vld [vmem:[#allocation5 + $0x20] sm:$0xff]
    %v153 = vld [vmem:[#allocation5 + $0x28] sm:$0xff]
    %v154 = vld [vmem:[#allocation5 + $0x30] sm:$0xff]
    %v155 = vld [vmem:[#allocation5 + $0x38] sm:$0xff]
    %v156 = vld [vmem:[#allocation5 + $0x40] sm:$0xff]
    %v157 = vld [vmem:[#allocation5 + $0x48] sm:$0xff]
    %v158 = vld [vmem:[#allocation5 + $0x50] sm:$0xff]
    %v159 = vld [vmem:[#allocation5 + $0x58] sm:$0xff]
    %v160 = vld [vmem:[#allocation5 + $0x60] sm:$0xff]
    %v161 = vld [vmem:[#allocation5 + $0x68] sm:$0xff]
    %v162 = vld [vmem:[#allocation5 + $0x70] sm:$0xff]
    %v163 = vld [vmem:[#allocation5 + $0x78] sm:$0xff]
    %v164 = vld [vmem:[#allocation5 + $0x80] sm:$0xff]
    %v165 = vld [vmem:[#allocation5 + $0x88] sm:$0xff]
    %v166 = vld [vmem:[#allocation5 + $0x90] sm:$0xff]
    %v167 = vld [vmem:[#allocation5 + $0x98] sm:$0xff]
    %v168 = vld [vmem:[#allocation5 + $0xa0] sm:$0xff]
    %v169 = vld [vmem:[#allocation5 + $0xa8] sm:$0xff]
    %v170 = vld [vmem:[#allocation5 + $0xb0] sm:$0xff]
    %v171 = vld [vmem:[#allocation5 + $0xb8] sm:$0xff]
    %v172 = vld [vmem:[#allocation5 + $0xc0] sm:$0xff]
    %v173 = vld [vmem:[#allocation5 + $0xc8] sm:$0xff]
    %v174 = vld [vmem:[#allocation5 + $0xd0] sm:$0xff]
    %v175 = vld [vmem:[#allocation5 + $0xd8] sm:$0xff]
    %v176 = vld [vmem:[#allocation5 + $0xe0] sm:$0xff]
    %v177 = vld [vmem:[#allocation5 + $0xe8] sm:$0xff]
    %v178 = vld [vmem:[#allocation5 + $0xf0] sm:$0xff]
    %v179 = vld [vmem:[#allocation5 + $0xf8] sm:$0xff]
    %v180 = vld [vmem:[#allocation5 + $0x100] sm:$0xff]
    %v181 = vld [vmem:[#allocation5 + $0x108] sm:$0xff]
    %v182 = vld [vmem:[#allocation5 + $0x110] sm:$0xff]
    %v183 = vld [vmem:[#allocation5 + $0x118] sm:$0xff]
    %v184 = vld [vmem:[#allocation5 + $0x120] sm:$0xff]
    %v185 = vld [vmem:[#allocation5 + $0x128] sm:$0xff]
    %v186 = vld [vmem:[#allocation5 + $0x130] sm:$0xff]
    %v187 = vld [vmem:[#allocation5 + $0x138] sm:$0xff]
    %v188 = vld [vmem:[#allocation5 + $0x140] sm:$0xff]
    %v189 = vld [vmem:[#allocation5 + $0x148] sm:$0xff]
    %v190 = vld [vmem:[#allocation5 + $0x150] sm:$0xff]
    %v191 = vld [vmem:[#allocation5 + $0x158] sm:$0xff]
    %v192 = vld [vmem:[#allocation5 + $0x160] sm:$0xff]
    %v193 = vld [vmem:[#allocation5 + $0x168] sm:$0xff]
    %v194 = vld [vmem:[#allocation5 + $0x170] sm:$0xff]
    %v195 = vld [vmem:[#allocation5 + $0x178] sm:$0xff]
    %v196 = vld [vmem:[#allocation5 + $0x180] sm:$0xff]
    %v197 = vld [vmem:[#allocation5 + $0x188] sm:$0xff]
    %v198 = vld [vmem:[#allocation5 + $0x190] sm:$0xff]
    %v199 = vld [vmem:[#allocation5 + $0x198] sm:$0xff]
    %v200 = vld [vmem:[#allocation5 + $0x1a0] sm:$0xff]
    %v201 = vld [vmem:[#allocation5 + $0x1a8] sm:$0xff]
    %v202 = vld [vmem:[#allocation5 + $0x1b0] sm:$0xff]
    %v203 = vld [vmem:[#allocation5 + $0x1b8] sm:$0xff]
    %v204 = vld [vmem:[#allocation5 + $0x1c0] sm:$0xff]
    %v205 = vld [vmem:[#allocation5 + $0x1c8] sm:$0xff]
    %v206 = vld [vmem:[#allocation5 + $0x1d0] sm:$0xff]
    %v207 = vld [vmem:[#allocation5 + $0x1d8] sm:$0xff]
    %v208 = vld [vmem:[#allocation5 + $0x1e0] sm:$0xff]
    %v209 = vld [vmem:[#allocation5 + $0x1e8] sm:$0xff]
    %v210 = vld [vmem:[#allocation5 + $0x1f0] sm:$0xff]
    %v211 = vld [vmem:[#allocation5 + $0x1f8] sm:$0xff]
    %v212 = vld [vmem:[#allocation5 + $0x200] sm:$0xff]
    %v213 = vld [vmem:[#allocation5 + $0x208] sm:$0xff]
    %v214 = vld [vmem:[#allocation5 + $0x210] sm:$0xff]
    %v215 = vld [vmem:[#allocation5 + $0x218] sm:$0xff]
    %v216 = vld [vmem:[#allocation5 + $0x220] sm:$0xff]
    %v217 = vld [vmem:[#allocation5 + $0x228] sm:$0xff]
    %v218 = vld [vmem:[#allocation5 + $0x230] sm:$0xff]
    %v219 = vld [vmem:[#allocation5 + $0x238] sm:$0xff]
    %v220 = vld [vmem:[#allocation5 + $0x240] sm:$0xff]
    %v221 = vld [vmem:[#allocation5 + $0x248] sm:$0xff]
    %v222 = vld [vmem:[#allocation5 + $0x250] sm:$0xff]
    %v223 = vld [vmem:[#allocation5 + $0x258] sm:$0xff]
    %v224 = vld [vmem:[#allocation5 + $0x260] sm:$0xff]
    %v225 = vld [vmem:[#allocation5 + $0x268] sm:$0xff]
    %v226 = vld [vmem:[#allocation5 + $0x270] sm:$0xff]
    %v227 = vld [vmem:[#allocation5 + $0x278] sm:$0xff]
    %v228 = vld [vmem:[#allocation5 + $0x280] sm:$0xff]
    %v229 = vld [vmem:[#allocation5 + $0x288] sm:$0xff]
    %v230 = vld [vmem:[#allocation5 + $0x290] sm:$0xff]
    %v231 = vld [vmem:[#allocation5 + $0x298] sm:$0xff]
    %v232 = vld [vmem:[#allocation5 + $0x2a0] sm:$0xff]
    %v233 = vld [vmem:[#allocation5 + $0x2a8] sm:$0xff]
    %v234 = vld [vmem:[#allocation5 + $0x2b0] sm:$0xff]
    %v235 = vld [vmem:[#allocation5 + $0x2b8] sm:$0xff]
    %v236 = vld [vmem:[#allocation5 + $0x2c0] sm:$0xf]
    %v237 = vld [vmem:[#allocation5 + $0x2c8] sm:$0xf]
    %v238 = vld [vmem:[#allocation5 + $0x2d0] sm:$0xf]
    %v239 = vld [vmem:[#allocation5 + $0x2d8] sm:$0xf]
    %vm240 = vcmask 424960
    %v242 = vsel %vm240, %v147, 0
    %vm244 = vcmask 1043456
    %v246 = vsel %vm244, %v236, 0
    %v249 = vsel %vm244, %v237, 0
    %v252 = vsel %vm244, %v238, 0
    %v255 = vsel %vm244, %v239, 0
    %257 = vmatpush.msra.mxu0 %v208
    %258 = vmatpush.msra.mxu0 %v204
    %259 = vmatpush.msra.mxu0 %v200
    %260 = vmatpush.msra.mxu0 %v196
    %261 = vmatpush.msra.mxu0 %v192
    %262 = vmatpush.msra.mxu0 %v188
    %263 = vmatpush.msra.mxu0 %v184
    %264 = vmatpush.msra.mxu0 %v180
    %265 = vmatpush.msra.mxu0 %v176
    %266 = vmatpush.msra.mxu0 %v172
    %267 = vmatpush.msra.mxu0 %v168
    %268 = vmatpush.msra.mxu0 %v164
    %269 = vmatpush.msra.mxu0 %v160
    %270 = vmatpush.msra.mxu0 %v156
    %271 = vmatpush.msra.mxu0 %v152
    %272 = vmatpush.msra.mxu0 %v148
    %273 = vmatmul.f32.gmra.mxu0 %v146
    %v274 = vpop.f32.mrf.mxu0
    %v275 = vadd.f32 0.0, %v274
    %276 = vdwg.mxu0
    %277 = vmatpush.msra.mxu0 0.0
    %278 = vmatpush.msra.mxu0 0.0
    %279 = vmatpush.msra.mxu0 0.0
    %280 = vmatpush.msra.mxu0 0.0
    %281 = vmatpush.msra.mxu0 0.0
    %282 = vmatpush.msra.mxu0 0.0
    %283 = vmatpush.msra.mxu0 0.0
    %284 = vmatpush.msra.mxu0 0.0
    %285 = vmatpush.msra.mxu0 0.0
    %286 = vmatpush.msra.mxu0 %v246
    %287 = vmatpush.msra.mxu0 %v232
    %288 = vmatpush.msra.mxu0 %v228
    %289 = vmatpush.msra.mxu0 %v224
    %290 = vmatpush.msra.mxu0 %v220
    %291 = vmatpush.msra.mxu0 %v216
    %292 = vmatpush.msra.mxu0 %v212
    %293 = vmatmul.f32.gmra.mxu0 %v242
    %v294 = vpop.f32.mrf.mxu0
    %v295 = vadd.f32 %v275, %v294
    %296 = vdwg.mxu0
    %297 = vmatpush.msra.mxu0 %v209
    %298 = vmatpush.msra.mxu0 %v205
    %299 = vmatpush.msra.mxu0 %v201
    %300 = vmatpush.msra.mxu0 %v197
    %301 = vmatpush.msra.mxu0 %v193
    %302 = vmatpush.msra.mxu0 %v189
    %303 = vmatpush.msra.mxu0 %v185
    %304 = vmatpush.msra.mxu0 %v181
    %305 = vmatpush.msra.mxu0 %v177
    %306 = vmatpush.msra.mxu0 %v173
    %307 = vmatpush.msra.mxu0 %v169
    %308 = vmatpush.msra.mxu0 %v165
    %309 = vmatpush.msra.mxu0 %v161
    %310 = vmatpush.msra.mxu0 %v157
    %311 = vmatpush.msra.mxu0 %v153
    %312 = vmatpush.msra.mxu0 %v149
    %313 = vmatmul.f32.gmra.mxu0 %v146
    %v314 = vpop.f32.mrf.mxu0
    %v315 = vadd.f32 0.0, %v314
    %316 = vdwg.mxu0
    %317 = vmatpush.msra.mxu0 0.0
    %318 = vmatpush.msra.mxu0 0.0
    %319 = vmatpush.msra.mxu0 0.0
    %320 = vmatpush.msra.mxu0 0.0
    %321 = vmatpush.msra.mxu0 0.0
    %322 = vmatpush.msra.mxu0 0.0
    %323 = vmatpush.msra.mxu0 0.0
    %324 = vmatpush.msra.mxu0 0.0
    %325 = vmatpush.msra.mxu0 0.0
    %326 = vmatpush.msra.mxu0 %v249
    %327 = vmatpush.msra.mxu0 %v233
    %328 = vmatpush.msra.mxu0 %v229
    %329 = vmatpush.msra.mxu0 %v225
    %330 = vmatpush.msra.mxu0 %v221
    %331 = vmatpush.msra.mxu0 %v217
    %332 = vmatpush.msra.mxu0 %v213
    %333 = vmatmul.f32.gmra.mxu0 %v242
    %v334 = vpop.f32.mrf.mxu0
    %v335 = vadd.f32 %v315, %v334
    %336 = vdwg.mxu0
    %337 = vmatpush.msra.mxu0 %v210
    %338 = vmatpush.msra.mxu0 %v206
    %339 = vmatpush.msra.mxu0 %v202
    %340 = vmatpush.msra.mxu0 %v198
    %341 = vmatpush.msra.mxu0 %v194
    %342 = vmatpush.msra.mxu0 %v190
    %343 = vmatpush.msra.mxu0 %v186
    %344 = vmatpush.msra.mxu0 %v182
    %345 = vmatpush.msra.mxu0 %v178
    %346 = vmatpush.msra.mxu0 %v174
    %347 = vmatpush.msra.mxu0 %v170
    %348 = vmatpush.msra.mxu0 %v166
    %349 = vmatpush.msra.mxu0 %v162
    %350 = vmatpush.msra.mxu0 %v158
    %351 = vmatpush.msra.mxu0 %v154
    %352 = vmatpush.msra.mxu0 %v150
    %353 = vmatmul.f32.gmra.mxu0 %v146
    %v354 = vpop.f32.mrf.mxu0
    %v355 = vadd.f32 0.0, %v354
    %356 = vdwg.mxu0
    %357 = vmatpush.msra.mxu0 0.0
    %358 = vmatpush.msra.mxu0 0.0
    %359 = vmatpush.msra.mxu0 0.0
    %360 = vmatpush.msra.mxu0 0.0
    %361 = vmatpush.msra.mxu0 0.0
    %362 = vmatpush.msra.mxu0 0.0
    %363 = vmatpush.msra.mxu0 0.0
    %364 = vmatpush.msra.mxu0 0.0
    %365 = vmatpush.msra.mxu0 0.0
    %366 = vmatpush.msra.mxu0 %v252
    %367 = vmatpush.msra.mxu0 %v234
    %368 = vmatpush.msra.mxu0 %v230
    %369 = vmatpush.msra.mxu0 %v226
    %370 = vmatpush.msra.mxu0 %v222
    %371 = vmatpush.msra.mxu0 %v218
    %372 = vmatpush.msra.mxu0 %v214
    %373 = vmatmul.f32.gmra.mxu0 %v242
    %v374 = vpop.f32.mrf.mxu0
    %v375 = vadd.f32 %v355, %v374
    %376 = vdwg.mxu0
    %377 = vmatpush.msra.mxu0 %v211
    %378 = vmatpush.msra.mxu0 %v207
    %379 = vmatpush.msra.mxu0 %v203
    %380 = vmatpush.msra.mxu0 %v199
    %381 = vmatpush.msra.mxu0 %v195
    %382 = vmatpush.msra.mxu0 %v191
    %383 = vmatpush.msra.mxu0 %v187
    %384 = vmatpush.msra.mxu0 %v183
    %385 = vmatpush.msra.mxu0 %v179
    %386 = vmatpush.msra.mxu0 %v175
    %387 = vmatpush.msra.mxu0 %v171
    %388 = vmatpush.msra.mxu0 %v167
    %389 = vmatpush.msra.mxu0 %v163
    %390 = vmatpush.msra.mxu0 %v159
    %391 = vmatpush.msra.mxu0 %v155
    %392 = vmatpush.msra.mxu0 %v151
    %393 = vmatmul.f32.gmra.mxu0 %v146
    %v394 = vpop.f32.mrf.mxu0
    %v395 = vadd.f32 0.0, %v394
    %396 = vdwg.mxu0
    %397 = vmatpush.msra.mxu0 0.0
    %398 = vmatpush.msra.mxu0 0.0
    %399 = vmatpush.msra.mxu0 0.0
    %400 = vmatpush.msra.mxu0 0.0
    %401 = vmatpush.msra.mxu0 0.0
    %402 = vmatpush.msra.mxu0 0.0
    %403 = vmatpush.msra.mxu0 0.0
    %404 = vmatpush.msra.mxu0 0.0
    %405 = vmatpush.msra.mxu0 0.0
    %406 = vmatpush.msra.mxu0 %v255
    %407 = vmatpush.msra.mxu0 %v235
    %408 = vmatpush.msra.mxu0 %v231
    %409 = vmatpush.msra.mxu0 %v227
    %410 = vmatpush.msra.mxu0 %v223
    %411 = vmatpush.msra.mxu0 %v219
    %412 = vmatpush.msra.mxu0 %v215
    %413 = vmatmul.f32.gmra.mxu0 %v242
    %v414 = vpop.f32.mrf.mxu0
    %v415 = vadd.f32 %v395, %v414
    %416 = vdwg.mxu0
    %v417 = vld [vmem:[#allocation7] sm:$0xf]
    %v419 = vperm.slane %v417, 0
    %v420 = vperm.slane %v417, 1
    %v421 = vperm.slane %v417, 2
    %v422 = vperm.slane %v417, 3
    %v427 = vmul.f32 %v295, %v419
    %v428 = vmul.f32 %v335, %v420
    %v429 = vmul.f32 %v375, %v421
    %v430 = vmul.f32 %v415, %v422
    %v431 = vld [vmem:[#allocation8] sm:$0xf]
    %v433 = vperm.slane %v431, 0
    %v434 = vperm.slane %v431, 1
    %v435 = vperm.slane %v431, 2
    %v436 = vperm.slane %v431, 3
    %v441 = vadd.f32 %v427, %v433
    %v442 = vadd.f32 %v428, %v434
    %v443 = vadd.f32 %v429, %v435
    %v444 = vadd.f32 %v430, %v436
    %v445 = vmax.f32 %v441, 0.0
    %v446 = vmax.f32 %v442, 0.0
    %v447 = vmax.f32 %v443, 0.0
    %v448 = vmax.f32 %v444, 0.0
    %v449 = vld [vmem:[#allocation10] sm:$0xff]
    %v450 = vld [vmem:[#allocation10 + $0x8] sm:$0xff]
    %v451 = vld [vmem:[#allocation10 + $0x10] sm:$0xff]
    %v452 = vld [vmem:[#allocation10 + $0x18] sm:$0xff]
    %v453 = vld [vmem:[#allocation10 + $0x20] sm:$0xff]
    %v454 = vld [vmem:[#allocation10 + $0x28] sm:$0xff]
    %v455 = vld [vmem:[#allocation10 + $0x30] sm:$0xff]
    %v456 = vld [vmem:[#allocation10 + $0x38] sm:$0xff]
    %v457 = vld [vmem:[#allocation10 + $0x40] sm:$0xff]
    %v458 = vld [vmem:[#allocation10 + $0x48] sm:$0xff]
    %v459 = vld [vmem:[#allocation10 + $0x50] sm:$0xff]
    %v460 = vld [vmem:[#allocation10 + $0x58] sm:$0xff]
    %v461 = vld [vmem:[#allocation10 + $0x60] sm:$0xff]
    %v462 = vld [vmem:[#allocation10 + $0x68] sm:$0xff]
    %v463 = vld [vmem:[#allocation10 + $0x70] sm:$0xff]
    %v464 = vld [vmem:[#allocation10 + $0x78] sm:$0xff]
    %v465 = vld [vmem:[#allocation10 + $0x80] sm:$0xff]
    %v466 = vld [vmem:[#allocation10 + $0x88] sm:$0xff]
    %v467 = vld [vmem:[#allocation10 + $0x90] sm:$0xff]
    %v468 = vld [vmem:[#allocation10 + $0x98] sm:$0xff]
    %v469 = vld [vmem:[#allocation10 + $0xa0] sm:$0xff]
    %v470 = vld [vmem:[#allocation10 + $0xa8] sm:$0xff]
    %v471 = vld [vmem:[#allocation10 + $0xb0] sm:$0xff]
    %v472 = vld [vmem:[#allocation10 + $0xb8] sm:$0xff]
    %v473 = vld [vmem:[#allocation10 + $0xc0] sm:$0xff]
    %v474 = vld [vmem:[#allocation10 + $0xc8] sm:$0xff]
    %v475 = vld [vmem:[#allocation10 + $0xd0] sm:$0xff]
    %v476 = vld [vmem:[#allocation10 + $0xd8] sm:$0xff]
    %v477 = vld [vmem:[#allocation10 + $0xe0] sm:$0xff]
    %v478 = vld [vmem:[#allocation10 + $0xe8] sm:$0xff]
    %v479 = vld [vmem:[#allocation10 + $0xf0] sm:$0xff]
    %v480 = vld [vmem:[#allocation10 + $0xf8] sm:$0xff]
    %v481 = vld [vmem:[#allocation10 + $0x100] sm:$0xff]
    %v482 = vld [vmem:[#allocation10 + $0x108] sm:$0xff]
    %v483 = vld [vmem:[#allocation10 + $0x110] sm:$0xff]
    %v484 = vld [vmem:[#allocation10 + $0x118] sm:$0xff]
    %v485 = vld [vmem:[#allocation10 + $0x120] sm:$0xff]
    %v486 = vld [vmem:[#allocation10 + $0x128] sm:$0xff]
    %v487 = vld [vmem:[#allocation10 + $0x130] sm:$0xff]
    %v488 = vld [vmem:[#allocation10 + $0x138] sm:$0xff]
    %v489 = vld [vmem:[#allocation10 + $0x140] sm:$0xff]
    %v490 = vld [vmem:[#allocation10 + $0x148] sm:$0xff]
    %v491 = vld [vmem:[#allocation10 + $0x150] sm:$0xff]
    %v492 = vld [vmem:[#allocation10 + $0x158] sm:$0xff]
    %v493 = vld [vmem:[#allocation10 + $0x160] sm:$0xff]
    %v494 = vld [vmem:[#allocation10 + $0x168] sm:$0xff]
    %v495 = vld [vmem:[#allocation10 + $0x170] sm:$0xff]
    %v496 = vld [vmem:[#allocation10 + $0x178] sm:$0xff]
    %v497 = vld [vmem:[#allocation10 + $0x180] sm:$0xff]
    %v498 = vld [vmem:[#allocation10 + $0x188] sm:$0xff]
    %v499 = vld [vmem:[#allocation10 + $0x190] sm:$0xff]
    %v500 = vld [vmem:[#allocation10 + $0x198] sm:$0xff]
    %v501 = vld [vmem:[#allocation10 + $0x1a0] sm:$0xff]
    %v502 = vld [vmem:[#allocation10 + $0x1a8] sm:$0xff]
    %v503 = vld [vmem:[#allocation10 + $0x1b0] sm:$0xff]
    %v504 = vld [vmem:[#allocation10 + $0x1b8] sm:$0xff]
    %v505 = vld [vmem:[#allocation10 + $0x1c0] sm:$0xff]
    %v506 = vld [vmem:[#allocation10 + $0x1c8] sm:$0xff]
    %v507 = vld [vmem:[#allocation10 + $0x1d0] sm:$0xff]
    %v508 = vld [vmem:[#allocation10 + $0x1d8] sm:$0xff]
    %v509 = vld [vmem:[#allocation10 + $0x1e0] sm:$0xff]
    %v510 = vld [vmem:[#allocation10 + $0x1e8] sm:$0xff]
    %v511 = vld [vmem:[#allocation10 + $0x1f0] sm:$0xff]
    %v512 = vld [vmem:[#allocation10 + $0x1f8] sm:$0xff]
    %v513 = vld [vmem:[#allocation10 + $0x200] sm:$0xff]
    %v514 = vld [vmem:[#allocation10 + $0x208] sm:$0xff]
    %v515 = vld [vmem:[#allocation10 + $0x210] sm:$0xff]
    %v516 = vld [vmem:[#allocation10 + $0x218] sm:$0xff]
    %v517 = vld [vmem:[#allocation10 + $0x220] sm:$0xff]
    %v518 = vld [vmem:[#allocation10 + $0x228] sm:$0xff]
    %v519 = vld [vmem:[#allocation10 + $0x230] sm:$0xff]
    %v520 = vld [vmem:[#allocation10 + $0x238] sm:$0xff]
    %v521 = vld [vmem:[#allocation10 + $0x240] sm:$0xff]
    %v522 = vld [vmem:[#allocation10 + $0x248] sm:$0xff]
    %v523 = vld [vmem:[#allocation10 + $0x250] sm:$0xff]
    %v524 = vld [vmem:[#allocation10 + $0x258] sm:$0xff]
    %v525 = vld [vmem:[#allocation10 + $0x260] sm:$0xff]
    %v526 = vld [vmem:[#allocation10 + $0x268] sm:$0xff]
    %v527 = vld [vmem:[#allocation10 + $0x270] sm:$0xff]
    %v528 = vld [vmem:[#allocation10 + $0x278] sm:$0xff]
    %v529 = vld [vmem:[#allocation10 + $0x280] sm:$0xff]
    %v530 = vld [vmem:[#allocation10 + $0x288] sm:$0xff]
    %v531 = vld [vmem:[#allocation10 + $0x290] sm:$0xff]
    %v532 = vld [vmem:[#allocation10 + $0x298] sm:$0xff]
    %v533 = vld [vmem:[#allocation10 + $0x2a0] sm:$0xff]
    %v534 = vld [vmem:[#allocation10 + $0x2a8] sm:$0xff]
    %v535 = vld [vmem:[#allocation10 + $0x2b0] sm:$0xff]
    %v536 = vld [vmem:[#allocation10 + $0x2b8] sm:$0xff]
    %v537 = vld [vmem:[#allocation10 + $0x2c0] sm:$0xff]
    %v538 = vld [vmem:[#allocation10 + $0x2c8] sm:$0xff]
    %v539 = vld [vmem:[#allocation10 + $0x2d0] sm:$0xff]
    %v540 = vld [vmem:[#allocation10 + $0x2d8] sm:$0xff]
    %v541 = vld [vmem:[#allocation10 + $0x2e0] sm:$0xff]
    %v542 = vld [vmem:[#allocation10 + $0x2e8] sm:$0xff]
    %v543 = vld [vmem:[#allocation10 + $0x2f0] sm:$0xff]
    %v544 = vld [vmem:[#allocation10 + $0x2f8] sm:$0xff]
    %v545 = vld [vmem:[#allocation10 + $0x300] sm:$0xff]
    %v546 = vld [vmem:[#allocation10 + $0x308] sm:$0xff]
    %v547 = vld [vmem:[#allocation10 + $0x310] sm:$0xff]
    %v548 = vld [vmem:[#allocation10 + $0x318] sm:$0xff]
    %v549 = vld [vmem:[#allocation10 + $0x320] sm:$0xff]
    %v550 = vld [vmem:[#allocation10 + $0x328] sm:$0xff]
    %v551 = vld [vmem:[#allocation10 + $0x330] sm:$0xff]
    %v552 = vld [vmem:[#allocation10 + $0x338] sm:$0xff]
    %v553 = vld [vmem:[#allocation10 + $0x340] sm:$0xff]
    %v554 = vld [vmem:[#allocation10 + $0x348] sm:$0xff]
    %v555 = vld [vmem:[#allocation10 + $0x350] sm:$0xff]
    %v556 = vld [vmem:[#allocation10 + $0x358] sm:$0xff]
    %v557 = vld [vmem:[#allocation10 + $0x360] sm:$0xff]
    %v558 = vld [vmem:[#allocation10 + $0x368] sm:$0xff]
    %v559 = vld [vmem:[#allocation10 + $0x370] sm:$0xff]
    %v560 = vld [vmem:[#allocation10 + $0x378] sm:$0xff]
    %v561 = vld [vmem:[#allocation10 + $0x380] sm:$0xff]
    %v562 = vld [vmem:[#allocation10 + $0x388] sm:$0xff]
    %v563 = vld [vmem:[#allocation10 + $0x390] sm:$0xff]
    %v564 = vld [vmem:[#allocation10 + $0x398] sm:$0xff]
    %v565 = vld [vmem:[#allocation10 + $0x3a0] sm:$0xff]
    %v566 = vld [vmem:[#allocation10 + $0x3a8] sm:$0xff]
    %v567 = vld [vmem:[#allocation10 + $0x3b0] sm:$0xff]
    %v568 = vld [vmem:[#allocation10 + $0x3b8] sm:$0xff]
    %v569 = vld [vmem:[#allocation10 + $0x3c0] sm:$0xff]
    %v570 = vld [vmem:[#allocation10 + $0x3c8] sm:$0xff]
    %v571 = vld [vmem:[#allocation10 + $0x3d0] sm:$0xff]
    %v572 = vld [vmem:[#allocation10 + $0x3d8] sm:$0xff]
    %v573 = vld [vmem:[#allocation10 + $0x3e0] sm:$0xff]
    %v574 = vld [vmem:[#allocation10 + $0x3e8] sm:$0xff]
    %v575 = vld [vmem:[#allocation10 + $0x3f0] sm:$0xff]
    %v576 = vld [vmem:[#allocation10 + $0x3f8] sm:$0xff]
    %v577 = vld [vmem:[#allocation10 + $0x400] sm:$0xff]
    %v578 = vld [vmem:[#allocation10 + $0x408] sm:$0xff]
    %v579 = vld [vmem:[#allocation10 + $0x410] sm:$0xff]
    %v580 = vld [vmem:[#allocation10 + $0x418] sm:$0xff]
    %v581 = vld [vmem:[#allocation10 + $0x420] sm:$0xff]
    %v582 = vld [vmem:[#allocation10 + $0x428] sm:$0xff]
    %v583 = vld [vmem:[#allocation10 + $0x430] sm:$0xff]
    %v584 = vld [vmem:[#allocation10 + $0x438] sm:$0xff]
    %v585 = vld [vmem:[#allocation10 + $0x440] sm:$0xff]
    %v586 = vld [vmem:[#allocation10 + $0x448] sm:$0xff]
    %v587 = vld [vmem:[#allocation10 + $0x450] sm:$0xff]
    %v588 = vld [vmem:[#allocation10 + $0x458] sm:$0xff]
    %v589 = vld [vmem:[#allocation10 + $0x460] sm:$0xff]
    %v590 = vld [vmem:[#allocation10 + $0x468] sm:$0xff]
    %v591 = vld [vmem:[#allocation10 + $0x470] sm:$0xff]
    %v592 = vld [vmem:[#allocation10 + $0x478] sm:$0xff]
    %v593 = vld [vmem:[#allocation10 + $0x480] sm:$0xff]
    %v594 = vld [vmem:[#allocation10 + $0x488] sm:$0xff]
    %v595 = vld [vmem:[#allocation10 + $0x490] sm:$0xff]
    %v596 = vld [vmem:[#allocation10 + $0x498] sm:$0xff]
    %v597 = vld [vmem:[#allocation10 + $0x4a0] sm:$0xff]
    %v598 = vld [vmem:[#allocation10 + $0x4a8] sm:$0xff]
    %v599 = vld [vmem:[#allocation10 + $0x4b0] sm:$0xff]
    %v600 = vld [vmem:[#allocation10 + $0x4b8] sm:$0xff]
    %v601 = vld [vmem:[#allocation10 + $0x4c0] sm:$0xff]
    %v602 = vld [vmem:[#allocation10 + $0x4c8] sm:$0xff]
    %v603 = vld [vmem:[#allocation10 + $0x4d0] sm:$0xff]
    %v604 = vld [vmem:[#allocation10 + $0x4d8] sm:$0xff]
    %v605 = vld [vmem:[#allocation10 + $0x4e0] sm:$0xff]
    %v606 = vld [vmem:[#allocation10 + $0x4e8] sm:$0xff]
    %v607 = vld [vmem:[#allocation10 + $0x4f0] sm:$0xff]
    %v608 = vld [vmem:[#allocation10 + $0x4f8] sm:$0xff]
    %v609 = vld [vmem:[#allocation10 + $0x500] sm:$0xff]
    %v610 = vld [vmem:[#allocation10 + $0x508] sm:$0xff]
    %v611 = vld [vmem:[#allocation10 + $0x510] sm:$0xff]
    %v612 = vld [vmem:[#allocation10 + $0x518] sm:$0xff]
    %v613 = vld [vmem:[#allocation10 + $0x520] sm:$0xff]
    %v614 = vld [vmem:[#allocation10 + $0x528] sm:$0xff]
    %v615 = vld [vmem:[#allocation10 + $0x530] sm:$0xff]
    %v616 = vld [vmem:[#allocation10 + $0x538] sm:$0xff]
    %v617 = vld [vmem:[#allocation10 + $0x540] sm:$0xff]
    %v618 = vld [vmem:[#allocation10 + $0x548] sm:$0xff]
    %v619 = vld [vmem:[#allocation10 + $0x550] sm:$0xff]
    %v620 = vld [vmem:[#allocation10 + $0x558] sm:$0xff]
    %v621 = vld [vmem:[#allocation10 + $0x560] sm:$0xff]
    %v622 = vld [vmem:[#allocation10 + $0x568] sm:$0xff]
    %v623 = vld [vmem:[#allocation10 + $0x570] sm:$0xff]
    %v624 = vld [vmem:[#allocation10 + $0x578] sm:$0xff]
    %v625 = vld [vmem:[#allocation10 + $0x580] sm:$0xff]
    %v626 = vld [vmem:[#allocation10 + $0x588] sm:$0xff]
    %v627 = vld [vmem:[#allocation10 + $0x590] sm:$0xff]
    %v628 = vld [vmem:[#allocation10 + $0x598] sm:$0xff]
    %v629 = vld [vmem:[#allocation10 + $0x5a0] sm:$0xff]
    %v630 = vld [vmem:[#allocation10 + $0x5a8] sm:$0xff]
    %v631 = vld [vmem:[#allocation10 + $0x5b0] sm:$0xff]
    %v632 = vld [vmem:[#allocation10 + $0x5b8] sm:$0xff]
    %v633 = vld [vmem:[#allocation10 + $0x5c0] sm:$0xff]
    %v634 = vld [vmem:[#allocation10 + $0x5c8] sm:$0xff]
    %v635 = vld [vmem:[#allocation10 + $0x5d0] sm:$0xff]
    %v636 = vld [vmem:[#allocation10 + $0x5d8] sm:$0xff]
    %v637 = vld [vmem:[#allocation10 + $0x5e0] sm:$0xff]
    %v638 = vld [vmem:[#allocation10 + $0x5e8] sm:$0xff]
    %v639 = vld [vmem:[#allocation10 + $0x5f0] sm:$0xff]
    %v640 = vld [vmem:[#allocation10 + $0x5f8] sm:$0xff]
    %v641 = vld [vmem:[#allocation10 + $0x600] sm:$0xff]
    %v642 = vld [vmem:[#allocation10 + $0x608] sm:$0xff]
    %v643 = vld [vmem:[#allocation10 + $0x610] sm:$0xff]
    %v644 = vld [vmem:[#allocation10 + $0x618] sm:$0xff]
    %v645 = vld [vmem:[#allocation10 + $0x620] sm:$0xff]
    %v646 = vld [vmem:[#allocation10 + $0x628] sm:$0xff]
    %v647 = vld [vmem:[#allocation10 + $0x630] sm:$0xff]
    %v648 = vld [vmem:[#allocation10 + $0x638] sm:$0xff]
    %v649 = vld [vmem:[#allocation10 + $0x640] sm:$0xff]
    %v650 = vld [vmem:[#allocation10 + $0x648] sm:$0xff]
    %v651 = vld [vmem:[#allocation10 + $0x650] sm:$0xff]
    %v652 = vld [vmem:[#allocation10 + $0x658] sm:$0xff]
    %v653 = vld [vmem:[#allocation10 + $0x660] sm:$0xff]
    %v654 = vld [vmem:[#allocation10 + $0x668] sm:$0xff]
    %v655 = vld [vmem:[#allocation10 + $0x670] sm:$0xff]
    %v656 = vld [vmem:[#allocation10 + $0x678] sm:$0xff]
    %v657 = vld [vmem:[#allocation10 + $0x680] sm:$0xff]
    %v658 = vld [vmem:[#allocation10 + $0x688] sm:$0xff]
    %v659 = vld [vmem:[#allocation10 + $0x690] sm:$0xff]
    %v660 = vld [vmem:[#allocation10 + $0x698] sm:$0xff]
    %v661 = vld [vmem:[#allocation10 + $0x6a0] sm:$0xff]
    %v662 = vld [vmem:[#allocation10 + $0x6a8] sm:$0xff]
    %v663 = vld [vmem:[#allocation10 + $0x6b0] sm:$0xff]
    %v664 = vld [vmem:[#allocation10 + $0x6b8] sm:$0xff]
    %v665 = vld [vmem:[#allocation10 + $0x6c0] sm:$0xff]
    %v666 = vld [vmem:[#allocation10 + $0x6c8] sm:$0xff]
    %v667 = vld [vmem:[#allocation10 + $0x6d0] sm:$0xff]
    %v668 = vld [vmem:[#allocation10 + $0x6d8] sm:$0xff]
    %v669 = vld [vmem:[#allocation10 + $0x6e0] sm:$0xff]
    %v670 = vld [vmem:[#allocation10 + $0x6e8] sm:$0xff]
    %v671 = vld [vmem:[#allocation10 + $0x6f0] sm:$0xff]
    %v672 = vld [vmem:[#allocation10 + $0x6f8] sm:$0xff]
    %v673 = vld [vmem:[#allocation10 + $0x700] sm:$0xff]
    %v674 = vld [vmem:[#allocation10 + $0x708] sm:$0xff]
    %v675 = vld [vmem:[#allocation10 + $0x710] sm:$0xff]
    %v676 = vld [vmem:[#allocation10 + $0x718] sm:$0xff]
    %v677 = vld [vmem:[#allocation10 + $0x720] sm:$0xff]
    %v678 = vld [vmem:[#allocation10 + $0x728] sm:$0xff]
    %v679 = vld [vmem:[#allocation10 + $0x730] sm:$0xff]
    %v680 = vld [vmem:[#allocation10 + $0x738] sm:$0xff]
    %v681 = vld [vmem:[#allocation10 + $0x740] sm:$0xff]
    %v682 = vld [vmem:[#allocation10 + $0x748] sm:$0xff]
    %v683 = vld [vmem:[#allocation10 + $0x750] sm:$0xff]
    %v684 = vld [vmem:[#allocation10 + $0x758] sm:$0xff]
    %v685 = vld [vmem:[#allocation10 + $0x760] sm:$0xff]
    %v686 = vld [vmem:[#allocation10 + $0x768] sm:$0xff]
    %v687 = vld [vmem:[#allocation10 + $0x770] sm:$0xff]
    %v688 = vld [vmem:[#allocation10 + $0x778] sm:$0xff]
    %v689 = vld [vmem:[#allocation10 + $0x780] sm:$0xff]
    %v690 = vld [vmem:[#allocation10 + $0x788] sm:$0xff]
    %v691 = vld [vmem:[#allocation10 + $0x790] sm:$0xff]
    %v692 = vld [vmem:[#allocation10 + $0x798] sm:$0xff]
    %v693 = vld [vmem:[#allocation10 + $0x7a0] sm:$0xff]
    %v694 = vld [vmem:[#allocation10 + $0x7a8] sm:$0xff]
    %v695 = vld [vmem:[#allocation10 + $0x7b0] sm:$0xff]
    %v696 = vld [vmem:[#allocation10 + $0x7b8] sm:$0xff]
    %v697 = vld [vmem:[#allocation10 + $0x7c0] sm:$0xff]
    %v698 = vld [vmem:[#allocation10 + $0x7c8] sm:$0xff]
    %v699 = vld [vmem:[#allocation10 + $0x7d0] sm:$0xff]
    %v700 = vld [vmem:[#allocation10 + $0x7d8] sm:$0xff]
    %v701 = vld [vmem:[#allocation10 + $0x7e0] sm:$0xff]
    %v702 = vld [vmem:[#allocation10 + $0x7e8] sm:$0xff]
    %v703 = vld [vmem:[#allocation10 + $0x7f0] sm:$0xff]
    %v704 = vld [vmem:[#allocation10 + $0x7f8] sm:$0xff]
    %v705 = vld [vmem:[#allocation10 + $0x800] sm:$0xff]
    %v706 = vld [vmem:[#allocation10 + $0x808] sm:$0xff]
    %v707 = vld [vmem:[#allocation10 + $0x810] sm:$0xff]
    %v708 = vld [vmem:[#allocation10 + $0x818] sm:$0xff]
    %v709 = vld [vmem:[#allocation10 + $0x820] sm:$0xff]
    %v710 = vld [vmem:[#allocation10 + $0x828] sm:$0xff]
    %v711 = vld [vmem:[#allocation10 + $0x830] sm:$0xff]
    %v712 = vld [vmem:[#allocation10 + $0x838] sm:$0xff]
    %v713 = vld [vmem:[#allocation10 + $0x840] sm:$0xff]
    %v714 = vld [vmem:[#allocation10 + $0x848] sm:$0xff]
    %v715 = vld [vmem:[#allocation10 + $0x850] sm:$0xff]
    %v716 = vld [vmem:[#allocation10 + $0x858] sm:$0xff]
    %v717 = vld [vmem:[#allocation10 + $0x860] sm:$0xff]
    %v718 = vld [vmem:[#allocation10 + $0x868] sm:$0xff]
    %v719 = vld [vmem:[#allocation10 + $0x870] sm:$0xff]
    %v720 = vld [vmem:[#allocation10 + $0x878] sm:$0xff]
    %v721 = vld [vmem:[#allocation10 + $0x880] sm:$0xff]
    %v722 = vld [vmem:[#allocation10 + $0x888] sm:$0xff]
    %v723 = vld [vmem:[#allocation10 + $0x890] sm:$0xff]
    %v724 = vld [vmem:[#allocation10 + $0x898] sm:$0xff]
    %v725 = vld [vmem:[#allocation10 + $0x8a0] sm:$0xff]
    %v726 = vld [vmem:[#allocation10 + $0x8a8] sm:$0xff]
    %v727 = vld [vmem:[#allocation10 + $0x8b0] sm:$0xff]
    %v728 = vld [vmem:[#allocation10 + $0x8b8] sm:$0xff]
    %v729 = vld [vmem:[#allocation10 + $0x8c0] sm:$0xff]
    %v730 = vld [vmem:[#allocation10 + $0x8c8] sm:$0xff]
    %v731 = vld [vmem:[#allocation10 + $0x8d0] sm:$0xff]
    %v732 = vld [vmem:[#allocation10 + $0x8d8] sm:$0xff]
    %v733 = vld [vmem:[#allocation10 + $0x8e0] sm:$0xff]
    %v734 = vld [vmem:[#allocation10 + $0x8e8] sm:$0xff]
    %v735 = vld [vmem:[#allocation10 + $0x8f0] sm:$0xff]
    %v736 = vld [vmem:[#allocation10 + $0x8f8] sm:$0xff]
    %v737 = vld [vmem:[#allocation10 + $0x900] sm:$0xff]
    %v738 = vld [vmem:[#allocation10 + $0x908] sm:$0xff]
    %v739 = vld [vmem:[#allocation10 + $0x910] sm:$0xff]
    %v740 = vld [vmem:[#allocation10 + $0x918] sm:$0xff]
    %v741 = vld [vmem:[#allocation10 + $0x920] sm:$0xff]
    %v742 = vld [vmem:[#allocation10 + $0x928] sm:$0xff]
    %v743 = vld [vmem:[#allocation10 + $0x930] sm:$0xff]
    %v744 = vld [vmem:[#allocation10 + $0x938] sm:$0xff]
    %v745 = vld [vmem:[#allocation10 + $0x940] sm:$0xff]
    %v746 = vld [vmem:[#allocation10 + $0x948] sm:$0xff]
    %v747 = vld [vmem:[#allocation10 + $0x950] sm:$0xff]
    %v748 = vld [vmem:[#allocation10 + $0x958] sm:$0xff]
    %v749 = vld [vmem:[#allocation10 + $0x960] sm:$0xff]
    %v750 = vld [vmem:[#allocation10 + $0x968] sm:$0xff]
    %v751 = vld [vmem:[#allocation10 + $0x970] sm:$0xff]
    %v752 = vld [vmem:[#allocation10 + $0x978] sm:$0xff]
    %v753 = vld [vmem:[#allocation10 + $0x980] sm:$0xff]
    %v754 = vld [vmem:[#allocation10 + $0x988] sm:$0xff]
    %v755 = vld [vmem:[#allocation10 + $0x990] sm:$0xff]
    %v756 = vld [vmem:[#allocation10 + $0x998] sm:$0xff]
    %v757 = vld [vmem:[#allocation10 + $0x9a0] sm:$0xff]
    %v758 = vld [vmem:[#allocation10 + $0x9a8] sm:$0xff]
    %v759 = vld [vmem:[#allocation10 + $0x9b0] sm:$0xff]
    %v760 = vld [vmem:[#allocation10 + $0x9b8] sm:$0xff]
    %v761 = vld [vmem:[#allocation10 + $0x9c0] sm:$0xff]
    %v762 = vld [vmem:[#allocation10 + $0x9c8] sm:$0xff]
    %v763 = vld [vmem:[#allocation10 + $0x9d0] sm:$0xff]
    %v764 = vld [vmem:[#allocation10 + $0x9d8] sm:$0xff]
    %v765 = vld [vmem:[#allocation10 + $0x9e0] sm:$0xff]
    %v766 = vld [vmem:[#allocation10 + $0x9e8] sm:$0xff]
    %v767 = vld [vmem:[#allocation10 + $0x9f0] sm:$0xff]
    %v768 = vld [vmem:[#allocation10 + $0x9f8] sm:$0xff]
    %v769 = vld [vmem:[#allocation10 + $0xa00] sm:$0xff]
    %v770 = vld [vmem:[#allocation10 + $0xa08] sm:$0xff]
    %v771 = vld [vmem:[#allocation10 + $0xa10] sm:$0xff]
    %v772 = vld [vmem:[#allocation10 + $0xa18] sm:$0xff]
    %v773 = vld [vmem:[#allocation10 + $0xa20] sm:$0xff]
    %v774 = vld [vmem:[#allocation10 + $0xa28] sm:$0xff]
    %v775 = vld [vmem:[#allocation10 + $0xa30] sm:$0xff]
    %v776 = vld [vmem:[#allocation10 + $0xa38] sm:$0xff]
    %v777 = vld [vmem:[#allocation10 + $0xa40] sm:$0xff]
    %v778 = vld [vmem:[#allocation10 + $0xa48] sm:$0xff]
    %v779 = vld [vmem:[#allocation10 + $0xa50] sm:$0xff]
    %v780 = vld [vmem:[#allocation10 + $0xa58] sm:$0xff]
    %v781 = vld [vmem:[#allocation10 + $0xa60] sm:$0xff]
    %v782 = vld [vmem:[#allocation10 + $0xa68] sm:$0xff]
    %v783 = vld [vmem:[#allocation10 + $0xa70] sm:$0xff]
    %v784 = vld [vmem:[#allocation10 + $0xa78] sm:$0xff]
    %v785 = vld [vmem:[#allocation10 + $0xa80] sm:$0xff]
    %v786 = vld [vmem:[#allocation10 + $0xa88] sm:$0xff]
    %v787 = vld [vmem:[#allocation10 + $0xa90] sm:$0xff]
    %v788 = vld [vmem:[#allocation10 + $0xa98] sm:$0xff]
    %v789 = vld [vmem:[#allocation10 + $0xaa0] sm:$0xff]
    %v790 = vld [vmem:[#allocation10 + $0xaa8] sm:$0xff]
    %v791 = vld [vmem:[#allocation10 + $0xab0] sm:$0xff]
    %v792 = vld [vmem:[#allocation10 + $0xab8] sm:$0xff]
    %v793 = vld [vmem:[#allocation10 + $0xac0] sm:$0xff]
    %v794 = vld [vmem:[#allocation10 + $0xac8] sm:$0xff]
    %v795 = vld [vmem:[#allocation10 + $0xad0] sm:$0xff]
    %v796 = vld [vmem:[#allocation10 + $0xad8] sm:$0xff]
    %v797 = vld [vmem:[#allocation10 + $0xae0] sm:$0xff]
    %v798 = vld [vmem:[#allocation10 + $0xae8] sm:$0xff]
    %v799 = vld [vmem:[#allocation10 + $0xaf0] sm:$0xff]
    %v800 = vld [vmem:[#allocation10 + $0xaf8] sm:$0xff]
    %v801 = vld [vmem:[#allocation10 + $0xb00] sm:$0xff]
    %v802 = vld [vmem:[#allocation10 + $0xb08] sm:$0xff]
    %v803 = vld [vmem:[#allocation10 + $0xb10] sm:$0xff]
    %v804 = vld [vmem:[#allocation10 + $0xb18] sm:$0xff]
    %v805 = vld [vmem:[#allocation10 + $0xb20] sm:$0xff]
    %v806 = vld [vmem:[#allocation10 + $0xb28] sm:$0xff]
    %v807 = vld [vmem:[#allocation10 + $0xb30] sm:$0xff]
    %v808 = vld [vmem:[#allocation10 + $0xb38] sm:$0xff]
    %v809 = vld [vmem:[#allocation10 + $0xb40] sm:$0xff]
    %v810 = vld [vmem:[#allocation10 + $0xb48] sm:$0xff]
    %v811 = vld [vmem:[#allocation10 + $0xb50] sm:$0xff]
    %v812 = vld [vmem:[#allocation10 + $0xb58] sm:$0xff]
    %v813 = vld [vmem:[#allocation10 + $0xb60] sm:$0xff]
    %v814 = vld [vmem:[#allocation10 + $0xb68] sm:$0xff]
    %v815 = vld [vmem:[#allocation10 + $0xb70] sm:$0xff]
    %v816 = vld [vmem:[#allocation10 + $0xb78] sm:$0xff]
    %v817 = vld [vmem:[#allocation10 + $0xb80] sm:$0xff]
    %v818 = vld [vmem:[#allocation10 + $0xb88] sm:$0xff]
    %v819 = vld [vmem:[#allocation10 + $0xb90] sm:$0xff]
    %v820 = vld [vmem:[#allocation10 + $0xb98] sm:$0xff]
    %v821 = vld [vmem:[#allocation10 + $0xba0] sm:$0xff]
    %v822 = vld [vmem:[#allocation10 + $0xba8] sm:$0xff]
    %v823 = vld [vmem:[#allocation10 + $0xbb0] sm:$0xff]
    %v824 = vld [vmem:[#allocation10 + $0xbb8] sm:$0xff]
    %v825 = vld [vmem:[#allocation10 + $0xbc0] sm:$0xff]
    %v826 = vld [vmem:[#allocation10 + $0xbc8] sm:$0xff]
    %v827 = vld [vmem:[#allocation10 + $0xbd0] sm:$0xff]
    %v828 = vld [vmem:[#allocation10 + $0xbd8] sm:$0xff]
    %v829 = vld [vmem:[#allocation10 + $0xbe0] sm:$0xff]
    %v830 = vld [vmem:[#allocation10 + $0xbe8] sm:$0xff]
    %v831 = vld [vmem:[#allocation10 + $0xbf0] sm:$0xff]
    %v832 = vld [vmem:[#allocation10 + $0xbf8] sm:$0xff]
    %v833 = vld [vmem:[#allocation10 + $0xc00] sm:$0xff]
    %v834 = vld [vmem:[#allocation10 + $0xc08] sm:$0xff]
    %v835 = vld [vmem:[#allocation10 + $0xc10] sm:$0xff]
    %v836 = vld [vmem:[#allocation10 + $0xc18] sm:$0xff]
    %v837 = vld [vmem:[#allocation10 + $0xc20] sm:$0xff]
    %v838 = vld [vmem:[#allocation10 + $0xc28] sm:$0xff]
    %v839 = vld [vmem:[#allocation10 + $0xc30] sm:$0xff]
    %v840 = vld [vmem:[#allocation10 + $0xc38] sm:$0xff]
    %v841 = vld [vmem:[#allocation10 + $0xc40] sm:$0xff]
    %v842 = vld [vmem:[#allocation10 + $0xc48] sm:$0xff]
    %v843 = vld [vmem:[#allocation10 + $0xc50] sm:$0xff]
    %v844 = vld [vmem:[#allocation10 + $0xc58] sm:$0xff]
    %v845 = vld [vmem:[#allocation10 + $0xc60] sm:$0xff]
    %v846 = vld [vmem:[#allocation10 + $0xc68] sm:$0xff]
    %v847 = vld [vmem:[#allocation10 + $0xc70] sm:$0xff]
    %v848 = vld [vmem:[#allocation10 + $0xc78] sm:$0xff]
    %v849 = vld [vmem:[#allocation10 + $0xc80] sm:$0xff]
    %v850 = vld [vmem:[#allocation10 + $0xc88] sm:$0xff]
    %v851 = vld [vmem:[#allocation10 + $0xc90] sm:$0xff]
    %v852 = vld [vmem:[#allocation10 + $0xc98] sm:$0xff]
    %v853 = vld [vmem:[#allocation10 + $0xca0] sm:$0xff]
    %v854 = vld [vmem:[#allocation10 + $0xca8] sm:$0xff]
    %v855 = vld [vmem:[#allocation10 + $0xcb0] sm:$0xff]
    %v856 = vld [vmem:[#allocation10 + $0xcb8] sm:$0xff]
    %v857 = vld [vmem:[#allocation10 + $0xcc0] sm:$0xff]
    %v858 = vld [vmem:[#allocation10 + $0xcc8] sm:$0xff]
    %v859 = vld [vmem:[#allocation10 + $0xcd0] sm:$0xff]
    %v860 = vld [vmem:[#allocation10 + $0xcd8] sm:$0xff]
    %v861 = vld [vmem:[#allocation10 + $0xce0] sm:$0xff]
    %v862 = vld [vmem:[#allocation10 + $0xce8] sm:$0xff]
    %v863 = vld [vmem:[#allocation10 + $0xcf0] sm:$0xff]
    %v864 = vld [vmem:[#allocation10 + $0xcf8] sm:$0xff]
    %v865 = vld [vmem:[#allocation10 + $0xd00] sm:$0xff]
    %v866 = vld [vmem:[#allocation10 + $0xd08] sm:$0xff]
    %v867 = vld [vmem:[#allocation10 + $0xd10] sm:$0xff]
    %v868 = vld [vmem:[#allocation10 + $0xd18] sm:$0xff]
    %v869 = vld [vmem:[#allocation10 + $0xd20] sm:$0xff]
    %v870 = vld [vmem:[#allocation10 + $0xd28] sm:$0xff]
    %v871 = vld [vmem:[#allocation10 + $0xd30] sm:$0xff]
    %v872 = vld [vmem:[#allocation10 + $0xd38] sm:$0xff]
    %v873 = vld [vmem:[#allocation10 + $0xd40] sm:$0xff]
    %v874 = vld [vmem:[#allocation10 + $0xd48] sm:$0xff]
    %v875 = vld [vmem:[#allocation10 + $0xd50] sm:$0xff]
    %v876 = vld [vmem:[#allocation10 + $0xd58] sm:$0xff]
    %v877 = vld [vmem:[#allocation10 + $0xd60] sm:$0xff]
    %v878 = vld [vmem:[#allocation10 + $0xd68] sm:$0xff]
    %v879 = vld [vmem:[#allocation10 + $0xd70] sm:$0xff]
    %v880 = vld [vmem:[#allocation10 + $0xd78] sm:$0xff]
    %v881 = vld [vmem:[#allocation10 + $0xd80] sm:$0xff]
    %v882 = vld [vmem:[#allocation10 + $0xd88] sm:$0xff]
    %v883 = vld [vmem:[#allocation10 + $0xd90] sm:$0xff]
    %v884 = vld [vmem:[#allocation10 + $0xd98] sm:$0xff]
    %v885 = vld [vmem:[#allocation10 + $0xda0] sm:$0xff]
    %v886 = vld [vmem:[#allocation10 + $0xda8] sm:$0xff]
    %v887 = vld [vmem:[#allocation10 + $0xdb0] sm:$0xff]
    %v888 = vld [vmem:[#allocation10 + $0xdb8] sm:$0xff]
    %v889 = vld [vmem:[#allocation10 + $0xdc0] sm:$0xff]
    %v890 = vld [vmem:[#allocation10 + $0xdc8] sm:$0xff]
    %v891 = vld [vmem:[#allocation10 + $0xdd0] sm:$0xff]
    %v892 = vld [vmem:[#allocation10 + $0xdd8] sm:$0xff]
    %v893 = vld [vmem:[#allocation10 + $0xde0] sm:$0xff]
    %v894 = vld [vmem:[#allocation10 + $0xde8] sm:$0xff]
    %v895 = vld [vmem:[#allocation10 + $0xdf0] sm:$0xff]
    %v896 = vld [vmem:[#allocation10 + $0xdf8] sm:$0xff]
    %v897 = vld [vmem:[#allocation10 + $0xe00] sm:$0xff]
    %v898 = vld [vmem:[#allocation10 + $0xe08] sm:$0xff]
    %v899 = vld [vmem:[#allocation10 + $0xe10] sm:$0xff]
    %v900 = vld [vmem:[#allocation10 + $0xe18] sm:$0xff]
    %v901 = vld [vmem:[#allocation10 + $0xe20] sm:$0xff]
    %v902 = vld [vmem:[#allocation10 + $0xe28] sm:$0xff]
    %v903 = vld [vmem:[#allocation10 + $0xe30] sm:$0xff]
    %v904 = vld [vmem:[#allocation10 + $0xe38] sm:$0xff]
    %v905 = vld [vmem:[#allocation10 + $0xe40] sm:$0xff]
    %v906 = vld [vmem:[#allocation10 + $0xe48] sm:$0xff]
    %v907 = vld [vmem:[#allocation10 + $0xe50] sm:$0xff]
    %v908 = vld [vmem:[#allocation10 + $0xe58] sm:$0xff]
    %v909 = vld [vmem:[#allocation10 + $0xe60] sm:$0xff]
    %v910 = vld [vmem:[#allocation10 + $0xe68] sm:$0xff]
    %v911 = vld [vmem:[#allocation10 + $0xe70] sm:$0xff]
    %v912 = vld [vmem:[#allocation10 + $0xe78] sm:$0xff]
    %v913 = vld [vmem:[#allocation10 + $0xe80] sm:$0xff]
    %v914 = vld [vmem:[#allocation10 + $0xe88] sm:$0xff]
    %v915 = vld [vmem:[#allocation10 + $0xe90] sm:$0xff]
    %v916 = vld [vmem:[#allocation10 + $0xe98] sm:$0xff]
    %v917 = vld [vmem:[#allocation10 + $0xea0] sm:$0xff]
    %v918 = vld [vmem:[#allocation10 + $0xea8] sm:$0xff]
    %v919 = vld [vmem:[#allocation10 + $0xeb0] sm:$0xff]
    %v920 = vld [vmem:[#allocation10 + $0xeb8] sm:$0xff]
    %v921 = vld [vmem:[#allocation10 + $0xec0] sm:$0xff]
    %v922 = vld [vmem:[#allocation10 + $0xec8] sm:$0xff]
    %v923 = vld [vmem:[#allocation10 + $0xed0] sm:$0xff]
    %v924 = vld [vmem:[#allocation10 + $0xed8] sm:$0xff]
    %v925 = vld [vmem:[#allocation10 + $0xee0] sm:$0xff]
    %v926 = vld [vmem:[#allocation10 + $0xee8] sm:$0xff]
    %v927 = vld [vmem:[#allocation10 + $0xef0] sm:$0xff]
    %v928 = vld [vmem:[#allocation10 + $0xef8] sm:$0xff]
    %vm929 = vcmask 785408
    %v931 = vsel %vm929, %v448, 0
    %933 = vmatpush.msra.mxu0 %v569
    %934 = vmatpush.msra.mxu0 %v561
    %935 = vmatpush.msra.mxu0 %v553
    %936 = vmatpush.msra.mxu0 %v545
    %937 = vmatpush.msra.mxu0 %v537
    %938 = vmatpush.msra.mxu0 %v529
    %939 = vmatpush.msra.mxu0 %v521
    %940 = vmatpush.msra.mxu0 %v513
    %941 = vmatpush.msra.mxu0 %v505
    %942 = vmatpush.msra.mxu0 %v497
    %943 = vmatpush.msra.mxu0 %v489
    %944 = vmatpush.msra.mxu0 %v481
    %945 = vmatpush.msra.mxu0 %v473
    %946 = vmatpush.msra.mxu0 %v465
    %947 = vmatpush.msra.mxu0 %v457
    %948 = vmatpush.msra.mxu0 %v449
    %949 = vmatmul.f32.gmra.mxu0 %v445
    %v950 = vpop.f32.mrf.mxu0
    %v951 = vadd.f32 0.0, %v950
    %952 = vdwg.mxu0
    %953 = vmatpush.msra.mxu0 %v697
    %954 = vmatpush.msra.mxu0 %v689
    %955 = vmatpush.msra.mxu0 %v681
    %956 = vmatpush.msra.mxu0 %v673
    %957 = vmatpush.msra.mxu0 %v665
    %958 = vmatpush.msra.mxu0 %v657
    %959 = vmatpush.msra.mxu0 %v649
    %960 = vmatpush.msra.mxu0 %v641
    %961 = vmatpush.msra.mxu0 %v633
    %962 = vmatpush.msra.mxu0 %v625
    %963 = vmatpush.msra.mxu0 %v617
    %964 = vmatpush.msra.mxu0 %v609
    %965 = vmatpush.msra.mxu0 %v601
    %966 = vmatpush.msra.mxu0 %v593
    %967 = vmatpush.msra.mxu0 %v585
    %968 = vmatpush.msra.mxu0 %v577
    %969 = vmatmul.f32.gmra.mxu0 %v446
    %v970 = vpop.f32.mrf.mxu0
    %v971 = vadd.f32 %v951, %v970
    %972 = vdwg.mxu0
    %973 = vmatpush.msra.mxu0 %v825
    %974 = vmatpush.msra.mxu0 %v817
    %975 = vmatpush.msra.mxu0 %v809
    %976 = vmatpush.msra.mxu0 %v801
    %977 = vmatpush.msra.mxu0 %v793
    %978 = vmatpush.msra.mxu0 %v785
    %979 = vmatpush.msra.mxu0 %v777
    %980 = vmatpush.msra.mxu0 %v769
    %981 = vmatpush.msra.mxu0 %v761
    %982 = vmatpush.msra.mxu0 %v753
    %983 = vmatpush.msra.mxu0 %v745
    %984 = vmatpush.msra.mxu0 %v737
    %985 = vmatpush.msra.mxu0 %v729
    %986 = vmatpush.msra.mxu0 %v721
    %987 = vmatpush.msra.mxu0 %v713
    %988 = vmatpush.msra.mxu0 %v705
    %989 = vmatmul.f32.gmra.mxu0 %v447
    %v990 = vpop.f32.mrf.mxu0
    %v991 = vadd.f32 %v971, %v990
    %992 = vdwg.mxu0
    %993 = vmatpush.msra.mxu0 0.0
    %994 = vmatpush.msra.mxu0 0.0
    %995 = vmatpush.msra.mxu0 0.0
    %996 = vmatpush.msra.mxu0 0.0
    %997 = vmatpush.msra.mxu0 %v921
    %998 = vmatpush.msra.mxu0 %v913
    %999 = vmatpush.msra.mxu0 %v905
    %1000 = vmatpush.msra.mxu0 %v897
    %1001 = vmatpush.msra.mxu0 %v889
    %1002 = vmatpush.msra.mxu0 %v881
    %1003 = vmatpush.msra.mxu0 %v873
    %1004 = vmatpush.msra.mxu0 %v865
    %1005 = vmatpush.msra.mxu0 %v857
    %1006 = vmatpush.msra.mxu0 %v849
    %1007 = vmatpush.msra.mxu0 %v841
    %1008 = vmatpush.msra.mxu0 %v833
    %1009 = vmatmul.f32.gmra.mxu0 %v931
    %v1010 = vpop.f32.mrf.mxu0
    %v1011 = vadd.f32 %v991, %v1010
    %1012 = vdwg.mxu0
    %1013 = vmatpush.msra.mxu0 %v570
    %1014 = vmatpush.msra.mxu0 %v562
    %1015 = vmatpush.msra.mxu0 %v554
    %1016 = vmatpush.msra.mxu0 %v546
    %1017 = vmatpush.msra.mxu0 %v538
    %1018 = vmatpush.msra.mxu0 %v530
    %1019 = vmatpush.msra.mxu0 %v522
    %1020 = vmatpush.msra.mxu0 %v514
    %1021 = vmatpush.msra.mxu0 %v506
    %1022 = vmatpush.msra.mxu0 %v498
    %1023 = vmatpush.msra.mxu0 %v490
    %1024 = vmatpush.msra.mxu0 %v482
    %1025 = vmatpush.msra.mxu0 %v474
    %1026 = vmatpush.msra.mxu0 %v466
    %1027 = vmatpush.msra.mxu0 %v458
    %1028 = vmatpush.msra.mxu0 %v450
    %1029 = vmatmul.f32.gmra.mxu0 %v445
    %v1030 = vpop.f32.mrf.mxu0
    %v1031 = vadd.f32 0.0, %v1030
    %1032 = vdwg.mxu0
    %1033 = vmatpush.msra.mxu0 %v698
    %1034 = vmatpush.msra.mxu0 %v690
    %1035 = vmatpush.msra.mxu0 %v682
    %1036 = vmatpush.msra.mxu0 %v674
    %1037 = vmatpush.msra.mxu0 %v666
    %1038 = vmatpush.msra.mxu0 %v658
    %1039 = vmatpush.msra.mxu0 %v650
    %1040 = vmatpush.msra.mxu0 %v642
    %1041 = vmatpush.msra.mxu0 %v634
    %1042 = vmatpush.msra.mxu0 %v626
    %1043 = vmatpush.msra.mxu0 %v618
    %1044 = vmatpush.msra.mxu0 %v610
    %1045 = vmatpush.msra.mxu0 %v602
    %1046 = vmatpush.msra.mxu0 %v594
    %1047 = vmatpush.msra.mxu0 %v586
    %1048 = vmatpush.msra.mxu0 %v578
    %1049 = vmatmul.f32.gmra.mxu0 %v446
    %v1050 = vpop.f32.mrf.mxu0
    %v1051 = vadd.f32 %v1031, %v1050
    %1052 = vdwg.mxu0
    %1053 = vmatpush.msra.mxu0 %v826
    %1054 = vmatpush.msra.mxu0 %v818
    %1055 = vmatpush.msra.mxu0 %v810
    %1056 = vmatpush.msra.mxu0 %v802
    %1057 = vmatpush.msra.mxu0 %v794
    %1058 = vmatpush.msra.mxu0 %v786
    %1059 = vmatpush.msra.mxu0 %v778
    %1060 = vmatpush.msra.mxu0 %v770
    %1061 = vmatpush.msra.mxu0 %v762
    %1062 = vmatpush.msra.mxu0 %v754
    %1063 = vmatpush.msra.mxu0 %v746
    %1064 = vmatpush.msra.mxu0 %v738
    %1065 = vmatpush.msra.mxu0 %v730
    %1066 = vmatpush.msra.mxu0 %v722
    %1067 = vmatpush.msra.mxu0 %v714
    %1068 = vmatpush.msra.mxu0 %v706
    %1069 = vmatmul.f32.gmra.mxu0 %v447
    %v1070 = vpop.f32.mrf.mxu0
    %v1071 = vadd.f32 %v1051, %v1070
    %1072 = vdwg.mxu0
    %1073 = vmatpush.msra.mxu0 0.0
    %1074 = vmatpush.msra.mxu0 0.0
    %1075 = vmatpush.msra.mxu0 0.0
    %1076 = vmatpush.msra.mxu0 0.0
    %1077 = vmatpush.msra.mxu0 %v922
    %1078 = vmatpush.msra.mxu0 %v914
    %1079 = vmatpush.msra.mxu0 %v906
    %1080 = vmatpush.msra.mxu0 %v898
    %1081 = vmatpush.msra.mxu0 %v890
    %1082 = vmatpush.msra.mxu0 %v882
    %1083 = vmatpush.msra.mxu0 %v874
    %1084 = vmatpush.msra.mxu0 %v866
    %1085 = vmatpush.msra.mxu0 %v858
    %1086 = vmatpush.msra.mxu0 %v850
    %1087 = vmatpush.msra.mxu0 %v842
    %1088 = vmatpush.msra.mxu0 %v834
    %1089 = vmatmul.f32.gmra.mxu0 %v931
    %v1090 = vpop.f32.mrf.mxu0
    %v1091 = vadd.f32 %v1071, %v1090
    %1092 = vdwg.mxu0
    %1093 = vmatpush.msra.mxu0 %v571
    %1094 = vmatpush.msra.mxu0 %v563
    %1095 = vmatpush.msra.mxu0 %v555
    %1096 = vmatpush.msra.mxu0 %v547
    %1097 = vmatpush.msra.mxu0 %v539
    %1098 = vmatpush.msra.mxu0 %v531
    %1099 = vmatpush.msra.mxu0 %v523
    %1100 = vmatpush.msra.mxu0 %v515
    %1101 = vmatpush.msra.mxu0 %v507
    %1102 = vmatpush.msra.mxu0 %v499
    %1103 = vmatpush.msra.mxu0 %v491
    %1104 = vmatpush.msra.mxu0 %v483
    %1105 = vmatpush.msra.mxu0 %v475
    %1106 = vmatpush.msra.mxu0 %v467
    %1107 = vmatpush.msra.mxu0 %v459
    %1108 = vmatpush.msra.mxu0 %v451
    %1109 = vmatmul.f32.gmra.mxu0 %v445
    %v1110 = vpop.f32.mrf.mxu0
    %v1111 = vadd.f32 0.0, %v1110
    %1112 = vdwg.mxu0
    %1113 = vmatpush.msra.mxu0 %v699
    %1114 = vmatpush.msra.mxu0 %v691
    %1115 = vmatpush.msra.mxu0 %v683
    %1116 = vmatpush.msra.mxu0 %v675
    %1117 = vmatpush.msra.mxu0 %v667
    %1118 = vmatpush.msra.mxu0 %v659
    %1119 = vmatpush.msra.mxu0 %v651
    %1120 = vmatpush.msra.mxu0 %v643
    %1121 = vmatpush.msra.mxu0 %v635
    %1122 = vmatpush.msra.mxu0 %v627
    %1123 = vmatpush.msra.mxu0 %v619
    %1124 = vmatpush.msra.mxu0 %v611
    %1125 = vmatpush.msra.mxu0 %v603
    %1126 = vmatpush.msra.mxu0 %v595
    %1127 = vmatpush.msra.mxu0 %v587
    %1128 = vmatpush.msra.mxu0 %v579
    %1129 = vmatmul.f32.gmra.mxu0 %v446
    %v1130 = vpop.f32.mrf.mxu0
    %v1131 = vadd.f32 %v1111, %v1130
    %1132 = vdwg.mxu0
    %1133 = vmatpush.msra.mxu0 %v827
    %1134 = vmatpush.msra.mxu0 %v819
    %1135 = vmatpush.msra.mxu0 %v811
    %1136 = vmatpush.msra.mxu0 %v803
    %1137 = vmatpush.msra.mxu0 %v795
    %1138 = vmatpush.msra.mxu0 %v787
    %1139 = vmatpush.msra.mxu0 %v779
    %1140 = vmatpush.msra.mxu0 %v771
    %1141 = vmatpush.msra.mxu0 %v763
    %1142 = vmatpush.msra.mxu0 %v755
    %1143 = vmatpush.msra.mxu0 %v747
    %1144 = vmatpush.msra.mxu0 %v739
    %1145 = vmatpush.msra.mxu0 %v731
    %1146 = vmatpush.msra.mxu0 %v723
    %1147 = vmatpush.msra.mxu0 %v715
    %1148 = vmatpush.msra.mxu0 %v707
    %1149 = vmatmul.f32.gmra.mxu0 %v447
    %v1150 = vpop.f32.mrf.mxu0
    %v1151 = vadd.f32 %v1131, %v1150
    %1152 = vdwg.mxu0
    %1153 = vmatpush.msra.mxu0 0.0
    %1154 = vmatpush.msra.mxu0 0.0
    %1155 = vmatpush.msra.mxu0 0.0
    %1156 = vmatpush.msra.mxu0 0.0
    %1157 = vmatpush.msra.mxu0 %v923
    %1158 = vmatpush.msra.mxu0 %v915
    %1159 = vmatpush.msra.mxu0 %v907
    %1160 = vmatpush.msra.mxu0 %v899
    %1161 = vmatpush.msra.mxu0 %v891
    %1162 = vmatpush.msra.mxu0 %v883
    %1163 = vmatpush.msra.mxu0 %v875
    %1164 = vmatpush.msra.mxu0 %v867
    %1165 = vmatpush.msra.mxu0 %v859
    %1166 = vmatpush.msra.mxu0 %v851
    %1167 = vmatpush.msra.mxu0 %v843
    %1168 = vmatpush.msra.mxu0 %v835
    %1169 = vmatmul.f32.gmra.mxu0 %v931
    %v1170 = vpop.f32.mrf.mxu0
    %v1171 = vadd.f32 %v1151, %v1170
    %1172 = vdwg.mxu0
    %1173 = vmatpush.msra.mxu0 %v572
    %1174 = vmatpush.msra.mxu0 %v564
    %1175 = vmatpush.msra.mxu0 %v556
    %1176 = vmatpush.msra.mxu0 %v548
    %1177 = vmatpush.msra.mxu0 %v540
    %1178 = vmatpush.msra.mxu0 %v532
    %1179 = vmatpush.msra.mxu0 %v524
    %1180 = vmatpush.msra.mxu0 %v516
    %1181 = vmatpush.msra.mxu0 %v508
    %1182 = vmatpush.msra.mxu0 %v500
    %1183 = vmatpush.msra.mxu0 %v492
    %1184 = vmatpush.msra.mxu0 %v484
    %1185 = vmatpush.msra.mxu0 %v476
    %1186 = vmatpush.msra.mxu0 %v468
    %1187 = vmatpush.msra.mxu0 %v460
    %1188 = vmatpush.msra.mxu0 %v452
    %1189 = vmatmul.f32.gmra.mxu0 %v445
    %v1190 = vpop.f32.mrf.mxu0
    %v1191 = vadd.f32 0.0, %v1190
    %1192 = vdwg.mxu0
    %1193 = vmatpush.msra.mxu0 %v700
    %1194 = vmatpush.msra.mxu0 %v692
    %1195 = vmatpush.msra.mxu0 %v684
    %1196 = vmatpush.msra.mxu0 %v676
    %1197 = vmatpush.msra.mxu0 %v668
    %1198 = vmatpush.msra.mxu0 %v660
    %1199 = vmatpush.msra.mxu0 %v652
    %1200 = vmatpush.msra.mxu0 %v644
    %1201 = vmatpush.msra.mxu0 %v636
    %1202 = vmatpush.msra.mxu0 %v628
    %1203 = vmatpush.msra.mxu0 %v620
    %1204 = vmatpush.msra.mxu0 %v612
    %1205 = vmatpush.msra.mxu0 %v604
    %1206 = vmatpush.msra.mxu0 %v596
    %1207 = vmatpush.msra.mxu0 %v588
    %1208 = vmatpush.msra.mxu0 %v580
    %1209 = vmatmul.f32.gmra.mxu0 %v446
    %v1210 = vpop.f32.mrf.mxu0
    %v1211 = vadd.f32 %v1191, %v1210
    %1212 = vdwg.mxu0
    %1213 = vmatpush.msra.mxu0 %v828
    %1214 = vmatpush.msra.mxu0 %v820
    %1215 = vmatpush.msra.mxu0 %v812
    %1216 = vmatpush.msra.mxu0 %v804
    %1217 = vmatpush.msra.mxu0 %v796
    %1218 = vmatpush.msra.mxu0 %v788
    %1219 = vmatpush.msra.mxu0 %v780
    %1220 = vmatpush.msra.mxu0 %v772
    %1221 = vmatpush.msra.mxu0 %v764
    %1222 = vmatpush.msra.mxu0 %v756
    %1223 = vmatpush.msra.mxu0 %v748
    %1224 = vmatpush.msra.mxu0 %v740
    %1225 = vmatpush.msra.mxu0 %v732
    %1226 = vmatpush.msra.mxu0 %v724
    %1227 = vmatpush.msra.mxu0 %v716
    %1228 = vmatpush.msra.mxu0 %v708
    %1229 = vmatmul.f32.gmra.mxu0 %v447
    %v1230 = vpop.f32.mrf.mxu0
    %v1231 = vadd.f32 %v1211, %v1230
    %1232 = vdwg.mxu0
    %1233 = vmatpush.msra.mxu0 0.0
    %1234 = vmatpush.msra.mxu0 0.0
    %1235 = vmatpush.msra.mxu0 0.0
    %1236 = vmatpush.msra.mxu0 0.0
    %1237 = vmatpush.msra.mxu0 %v924
    %1238 = vmatpush.msra.mxu0 %v916
    %1239 = vmatpush.msra.mxu0 %v908
    %1240 = vmatpush.msra.mxu0 %v900
    %1241 = vmatpush.msra.mxu0 %v892
    %1242 = vmatpush.msra.mxu0 %v884
    %1243 = vmatpush.msra.mxu0 %v876
    %1244 = vmatpush.msra.mxu0 %v868
    %1245 = vmatpush.msra.mxu0 %v860
    %1246 = vmatpush.msra.mxu0 %v852
    %1247 = vmatpush.msra.mxu0 %v844
    %1248 = vmatpush.msra.mxu0 %v836
    %1249 = vmatmul.f32.gmra.mxu0 %v931
    %v1250 = vpop.f32.mrf.mxu0
    %v1251 = vadd.f32 %v1231, %v1250
    %1252 = vdwg.mxu0
    %1253 = vmatpush.msra.mxu0 %v573
    %1254 = vmatpush.msra.mxu0 %v565
    %1255 = vmatpush.msra.mxu0 %v557
    %1256 = vmatpush.msra.mxu0 %v549
    %1257 = vmatpush.msra.mxu0 %v541
    %1258 = vmatpush.msra.mxu0 %v533
    %1259 = vmatpush.msra.mxu0 %v525
    %1260 = vmatpush.msra.mxu0 %v517
    %1261 = vmatpush.msra.mxu0 %v509
    %1262 = vmatpush.msra.mxu0 %v501
    %1263 = vmatpush.msra.mxu0 %v493
    %1264 = vmatpush.msra.mxu0 %v485
    %1265 = vmatpush.msra.mxu0 %v477
    %1266 = vmatpush.msra.mxu0 %v469
    %1267 = vmatpush.msra.mxu0 %v461
    %1268 = vmatpush.msra.mxu0 %v453
    %1269 = vmatmul.f32.gmra.mxu0 %v445
    %v1270 = vpop.f32.mrf.mxu0
    %v1271 = vadd.f32 0.0, %v1270
    %1272 = vdwg.mxu0
    %1273 = vmatpush.msra.mxu0 %v701
    %1274 = vmatpush.msra.mxu0 %v693
    %1275 = vmatpush.msra.mxu0 %v685
    %1276 = vmatpush.msra.mxu0 %v677
    %1277 = vmatpush.msra.mxu0 %v669
    %1278 = vmatpush.msra.mxu0 %v661
    %1279 = vmatpush.msra.mxu0 %v653
    %1280 = vmatpush.msra.mxu0 %v645
    %1281 = vmatpush.msra.mxu0 %v637
    %1282 = vmatpush.msra.mxu0 %v629
    %1283 = vmatpush.msra.mxu0 %v621
    %1284 = vmatpush.msra.mxu0 %v613
    %1285 = vmatpush.msra.mxu0 %v605
    %1286 = vmatpush.msra.mxu0 %v597
    %1287 = vmatpush.msra.mxu0 %v589
    %1288 = vmatpush.msra.mxu0 %v581
    %1289 = vmatmul.f32.gmra.mxu0 %v446
    %v1290 = vpop.f32.mrf.mxu0
    %v1291 = vadd.f32 %v1271, %v1290
    %1292 = vdwg.mxu0
    %1293 = vmatpush.msra.mxu0 %v829
    %1294 = vmatpush.msra.mxu0 %v821
    %1295 = vmatpush.msra.mxu0 %v813
    %1296 = vmatpush.msra.mxu0 %v805
    %1297 = vmatpush.msra.mxu0 %v797
    %1298 = vmatpush.msra.mxu0 %v789
    %1299 = vmatpush.msra.mxu0 %v781
    %1300 = vmatpush.msra.mxu0 %v773
    %1301 = vmatpush.msra.mxu0 %v765
    %1302 = vmatpush.msra.mxu0 %v757
    %1303 = vmatpush.msra.mxu0 %v749
    %1304 = vmatpush.msra.mxu0 %v741
    %1305 = vmatpush.msra.mxu0 %v733
    %1306 = vmatpush.msra.mxu0 %v725
    %1307 = vmatpush.msra.mxu0 %v717
    %1308 = vmatpush.msra.mxu0 %v709
    %1309 = vmatmul.f32.gmra.mxu0 %v447
    %v1310 = vpop.f32.mrf.mxu0
    %v1311 = vadd.f32 %v1291, %v1310
    %1312 = vdwg.mxu0
    %1313 = vmatpush.msra.mxu0 0.0
    %1314 = vmatpush.msra.mxu0 0.0
    %1315 = vmatpush.msra.mxu0 0.0
    %1316 = vmatpush.msra.mxu0 0.0
    %1317 = vmatpush.msra.mxu0 %v925
    %1318 = vmatpush.msra.mxu0 %v917
    %1319 = vmatpush.msra.mxu0 %v909
    %1320 = vmatpush.msra.mxu0 %v901
    %1321 = vmatpush.msra.mxu0 %v893
    %1322 = vmatpush.msra.mxu0 %v885
    %1323 = vmatpush.msra.mxu0 %v877
    %1324 = vmatpush.msra.mxu0 %v869
    %1325 = vmatpush.msra.mxu0 %v861
    %1326 = vmatpush.msra.mxu0 %v853
    %1327 = vmatpush.msra.mxu0 %v845
    %1328 = vmatpush.msra.mxu0 %v837
    %1329 = vmatmul.f32.gmra.mxu0 %v931
    %v1330 = vpop.f32.mrf.mxu0
    %v1331 = vadd.f32 %v1311, %v1330
    %1332 = vdwg.mxu0
    %1333 = vmatpush.msra.mxu0 %v574
    %1334 = vmatpush.msra.mxu0 %v566
    %1335 = vmatpush.msra.mxu0 %v558
    %1336 = vmatpush.msra.mxu0 %v550
    %1337 = vmatpush.msra.mxu0 %v542
    %1338 = vmatpush.msra.mxu0 %v534
    %1339 = vmatpush.msra.mxu0 %v526
    %1340 = vmatpush.msra.mxu0 %v518
    %1341 = vmatpush.msra.mxu0 %v510
    %1342 = vmatpush.msra.mxu0 %v502
    %1343 = vmatpush.msra.mxu0 %v494
    %1344 = vmatpush.msra.mxu0 %v486
    %1345 = vmatpush.msra.mxu0 %v478
    %1346 = vmatpush.msra.mxu0 %v470
    %1347 = vmatpush.msra.mxu0 %v462
    %1348 = vmatpush.msra.mxu0 %v454
    %1349 = vmatmul.f32.gmra.mxu0 %v445
    %v1350 = vpop.f32.mrf.mxu0
    %v1351 = vadd.f32 0.0, %v1350
    %1352 = vdwg.mxu0
    %1353 = vmatpush.msra.mxu0 %v702
    %1354 = vmatpush.msra.mxu0 %v694
    %1355 = vmatpush.msra.mxu0 %v686
    %1356 = vmatpush.msra.mxu0 %v678
    %1357 = vmatpush.msra.mxu0 %v670
    %1358 = vmatpush.msra.mxu0 %v662
    %1359 = vmatpush.msra.mxu0 %v654
    %1360 = vmatpush.msra.mxu0 %v646
    %1361 = vmatpush.msra.mxu0 %v638
    %1362 = vmatpush.msra.mxu0 %v630
    %1363 = vmatpush.msra.mxu0 %v622
    %1364 = vmatpush.msra.mxu0 %v614
    %1365 = vmatpush.msra.mxu0 %v606
    %1366 = vmatpush.msra.mxu0 %v598
    %1367 = vmatpush.msra.mxu0 %v590
    %1368 = vmatpush.msra.mxu0 %v582
    %1369 = vmatmul.f32.gmra.mxu0 %v446
    %v1370 = vpop.f32.mrf.mxu0
    %v1371 = vadd.f32 %v1351, %v1370
    %1372 = vdwg.mxu0
    %1373 = vmatpush.msra.mxu0 %v830
    %1374 = vmatpush.msra.mxu0 %v822
    %1375 = vmatpush.msra.mxu0 %v814
    %1376 = vmatpush.msra.mxu0 %v806
    %1377 = vmatpush.msra.mxu0 %v798
    %1378 = vmatpush.msra.mxu0 %v790
    %1379 = vmatpush.msra.mxu0 %v782
    %1380 = vmatpush.msra.mxu0 %v774
    %1381 = vmatpush.msra.mxu0 %v766
    %1382 = vmatpush.msra.mxu0 %v758
    %1383 = vmatpush.msra.mxu0 %v750
    %1384 = vmatpush.msra.mxu0 %v742
    %1385 = vmatpush.msra.mxu0 %v734
    %1386 = vmatpush.msra.mxu0 %v726
    %1387 = vmatpush.msra.mxu0 %v718
    %1388 = vmatpush.msra.mxu0 %v710
    %1389 = vmatmul.f32.gmra.mxu0 %v447
    %v1390 = vpop.f32.mrf.mxu0
    %v1391 = vadd.f32 %v1371, %v1390
    %1392 = vdwg.mxu0
    %1393 = vmatpush.msra.mxu0 0.0
    %1394 = vmatpush.msra.mxu0 0.0
    %1395 = vmatpush.msra.mxu0 0.0
    %1396 = vmatpush.msra.mxu0 0.0
    %1397 = vmatpush.msra.mxu0 %v926
    %1398 = vmatpush.msra.mxu0 %v918
    %1399 = vmatpush.msra.mxu0 %v910
    %1400 = vmatpush.msra.mxu0 %v902
    %1401 = vmatpush.msra.mxu0 %v894
    %1402 = vmatpush.msra.mxu0 %v886
    %1403 = vmatpush.msra.mxu0 %v878
    %1404 = vmatpush.msra.mxu0 %v870
    %1405 = vmatpush.msra.mxu0 %v862
    %1406 = vmatpush.msra.mxu0 %v854
    %1407 = vmatpush.msra.mxu0 %v846
    %1408 = vmatpush.msra.mxu0 %v838
    %1409 = vmatmul.f32.gmra.mxu0 %v931
    %v1410 = vpop.f32.mrf.mxu0
    %v1411 = vadd.f32 %v1391, %v1410
    %1412 = vdwg.mxu0
    %1413 = vmatpush.msra.mxu0 %v575
    %1414 = vmatpush.msra.mxu0 %v567
    %1415 = vmatpush.msra.mxu0 %v559
    %1416 = vmatpush.msra.mxu0 %v551
    %1417 = vmatpush.msra.mxu0 %v543
    %1418 = vmatpush.msra.mxu0 %v535
    %1419 = vmatpush.msra.mxu0 %v527
    %1420 = vmatpush.msra.mxu0 %v519
    %1421 = vmatpush.msra.mxu0 %v511
    %1422 = vmatpush.msra.mxu0 %v503
    %1423 = vmatpush.msra.mxu0 %v495
    %1424 = vmatpush.msra.mxu0 %v487
    %1425 = vmatpush.msra.mxu0 %v479
    %1426 = vmatpush.msra.mxu0 %v471
    %1427 = vmatpush.msra.mxu0 %v463
    %1428 = vmatpush.msra.mxu0 %v455
    %1429 = vmatmul.f32.gmra.mxu0 %v445
    %v1430 = vpop.f32.mrf.mxu0
    %v1431 = vadd.f32 0.0, %v1430
    %1432 = vdwg.mxu0
    %1433 = vmatpush.msra.mxu0 %v703
    %1434 = vmatpush.msra.mxu0 %v695
    %1435 = vmatpush.msra.mxu0 %v687
    %1436 = vmatpush.msra.mxu0 %v679
    %1437 = vmatpush.msra.mxu0 %v671
    %1438 = vmatpush.msra.mxu0 %v663
    %1439 = vmatpush.msra.mxu0 %v655
    %1440 = vmatpush.msra.mxu0 %v647
    %1441 = vmatpush.msra.mxu0 %v639
    %1442 = vmatpush.msra.mxu0 %v631
    %1443 = vmatpush.msra.mxu0 %v623
    %1444 = vmatpush.msra.mxu0 %v615
    %1445 = vmatpush.msra.mxu0 %v607
    %1446 = vmatpush.msra.mxu0 %v599
    %1447 = vmatpush.msra.mxu0 %v591
    %1448 = vmatpush.msra.mxu0 %v583
    %1449 = vmatmul.f32.gmra.mxu0 %v446
    %v1450 = vpop.f32.mrf.mxu0
    %v1451 = vadd.f32 %v1431, %v1450
    %1452 = vdwg.mxu0
    %1453 = vmatpush.msra.mxu0 %v831
    %1454 = vmatpush.msra.mxu0 %v823
    %1455 = vmatpush.msra.mxu0 %v815
    %1456 = vmatpush.msra.mxu0 %v807
    %1457 = vmatpush.msra.mxu0 %v799
    %1458 = vmatpush.msra.mxu0 %v791
    %1459 = vmatpush.msra.mxu0 %v783
    %1460 = vmatpush.msra.mxu0 %v775
    %1461 = vmatpush.msra.mxu0 %v767
    %1462 = vmatpush.msra.mxu0 %v759
    %1463 = vmatpush.msra.mxu0 %v751
    %1464 = vmatpush.msra.mxu0 %v743
    %1465 = vmatpush.msra.mxu0 %v735
    %1466 = vmatpush.msra.mxu0 %v727
    %1467 = vmatpush.msra.mxu0 %v719
    %1468 = vmatpush.msra.mxu0 %v711
    %1469 = vmatmul.f32.gmra.mxu0 %v447
    %v1470 = vpop.f32.mrf.mxu0
    %v1471 = vadd.f32 %v1451, %v1470
    %1472 = vdwg.mxu0
    %1473 = vmatpush.msra.mxu0 0.0
    %1474 = vmatpush.msra.mxu0 0.0
    %1475 = vmatpush.msra.mxu0 0.0
    %1476 = vmatpush.msra.mxu0 0.0
    %1477 = vmatpush.msra.mxu0 %v927
    %1478 = vmatpush.msra.mxu0 %v919
    %1479 = vmatpush.msra.mxu0 %v911
    %1480 = vmatpush.msra.mxu0 %v903
    %1481 = vmatpush.msra.mxu0 %v895
    %1482 = vmatpush.msra.mxu0 %v887
    %1483 = vmatpush.msra.mxu0 %v879
    %1484 = vmatpush.msra.mxu0 %v871
    %1485 = vmatpush.msra.mxu0 %v863
    %1486 = vmatpush.msra.mxu0 %v855
    %1487 = vmatpush.msra.mxu0 %v847
    %1488 = vmatpush.msra.mxu0 %v839
    %1489 = vmatmul.f32.gmra.mxu0 %v931
    %v1490 = vpop.f32.mrf.mxu0
    %v1491 = vadd.f32 %v1471, %v1490
    %1492 = vdwg.mxu0
    %1493 = vmatpush.msra.mxu0 %v576
    %1494 = vmatpush.msra.mxu0 %v568
    %1495 = vmatpush.msra.mxu0 %v560
    %1496 = vmatpush.msra.mxu0 %v552
    %1497 = vmatpush.msra.mxu0 %v544
    %1498 = vmatpush.msra.mxu0 %v536
    %1499 = vmatpush.msra.mxu0 %v528
    %1500 = vmatpush.msra.mxu0 %v520
    %1501 = vmatpush.msra.mxu0 %v512
    %1502 = vmatpush.msra.mxu0 %v504
    %1503 = vmatpush.msra.mxu0 %v496
    %1504 = vmatpush.msra.mxu0 %v488
    %1505 = vmatpush.msra.mxu0 %v480
    %1506 = vmatpush.msra.mxu0 %v472
    %1507 = vmatpush.msra.mxu0 %v464
    %1508 = vmatpush.msra.mxu0 %v456
    %1509 = vmatmul.f32.gmra.mxu0 %v445
    %v1510 = vpop.f32.mrf.mxu0
    %v1511 = vadd.f32 0.0, %v1510
    %1512 = vdwg.mxu0
    %1513 = vmatpush.msra.mxu0 %v704
    %1514 = vmatpush.msra.mxu0 %v696
    %1515 = vmatpush.msra.mxu0 %v688
    %1516 = vmatpush.msra.mxu0 %v680
    %1517 = vmatpush.msra.mxu0 %v672
    %1518 = vmatpush.msra.mxu0 %v664
    %1519 = vmatpush.msra.mxu0 %v656
    %1520 = vmatpush.msra.mxu0 %v648
    %1521 = vmatpush.msra.mxu0 %v640
    %1522 = vmatpush.msra.mxu0 %v632
    %1523 = vmatpush.msra.mxu0 %v624
    %1524 = vmatpush.msra.mxu0 %v616
    %1525 = vmatpush.msra.mxu0 %v608
    %1526 = vmatpush.msra.mxu0 %v600
    %1527 = vmatpush.msra.mxu0 %v592
    %1528 = vmatpush.msra.mxu0 %v584
    %1529 = vmatmul.f32.gmra.mxu0 %v446
    %v1530 = vpop.f32.mrf.mxu0
    %v1531 = vadd.f32 %v1511, %v1530
    %1532 = vdwg.mxu0
    %1533 = vmatpush.msra.mxu0 %v832
    %1534 = vmatpush.msra.mxu0 %v824
    %1535 = vmatpush.msra.mxu0 %v816
    %1536 = vmatpush.msra.mxu0 %v808
    %1537 = vmatpush.msra.mxu0 %v800
    %1538 = vmatpush.msra.mxu0 %v792
    %1539 = vmatpush.msra.mxu0 %v784
    %1540 = vmatpush.msra.mxu0 %v776
    %1541 = vmatpush.msra.mxu0 %v768
    %1542 = vmatpush.msra.mxu0 %v760
    %1543 = vmatpush.msra.mxu0 %v752
    %1544 = vmatpush.msra.mxu0 %v744
    %1545 = vmatpush.msra.mxu0 %v736
    %1546 = vmatpush.msra.mxu0 %v728
    %1547 = vmatpush.msra.mxu0 %v720
    %1548 = vmatpush.msra.mxu0 %v712
    %1549 = vmatmul.f32.gmra.mxu0 %v447
    %v1550 = vpop.f32.mrf.mxu0
    %v1551 = vadd.f32 %v1531, %v1550
    %1552 = vdwg.mxu0
    %1553 = vmatpush.msra.mxu0 0.0
    %1554 = vmatpush.msra.mxu0 0.0
    %1555 = vmatpush.msra.mxu0 0.0
    %1556 = vmatpush.msra.mxu0 0.0
    %1557 = vmatpush.msra.mxu0 %v928
    %1558 = vmatpush.msra.mxu0 %v920
    %1559 = vmatpush.msra.mxu0 %v912
    %1560 = vmatpush.msra.mxu0 %v904
    %1561 = vmatpush.msra.mxu0 %v896
    %1562 = vmatpush.msra.mxu0 %v888
    %1563 = vmatpush.msra.mxu0 %v880
    %1564 = vmatpush.msra.mxu0 %v872
    %1565 = vmatpush.msra.mxu0 %v864
    %1566 = vmatpush.msra.mxu0 %v856
    %1567 = vmatpush.msra.mxu0 %v848
    %1568 = vmatpush.msra.mxu0 %v840
    %1569 = vmatmul.f32.gmra.mxu0 %v931
    %v1570 = vpop.f32.mrf.mxu0
    %v1571 = vadd.f32 %v1551, %v1570
    %1572 = vdwg.mxu0
    %v1573 = vld [vmem:[#allocation11] sm:$0xff]
    %v1575 = vperm.slane %v1573, 0
    %v1576 = vperm.slane %v1573, 1
    %v1577 = vperm.slane %v1573, 2
    %v1578 = vperm.slane %v1573, 3
    %v1579 = vperm.slane %v1573, 4
    %v1580 = vperm.slane %v1573, 5
    %v1581 = vperm.slane %v1573, 6
    %v1582 = vperm.slane %v1573, 7
    %v1591 = vmul.f32 %v1011, %v1575
    %v1592 = vmul.f32 %v1091, %v1576
    %v1593 = vmul.f32 %v1171, %v1577
    %v1594 = vmul.f32 %v1251, %v1578
    %v1595 = vmul.f32 %v1331, %v1579
    %v1596 = vmul.f32 %v1411, %v1580
    %v1597 = vmul.f32 %v1491, %v1581
    %v1598 = vmul.f32 %v1571, %v1582
    %v1599 = vld [vmem:[#allocation13] sm:$0xff]
    %v1601 = vperm.slane %v1599, 0
    %v1602 = vperm.slane %v1599, 1
    %v1603 = vperm.slane %v1599, 2
    %v1604 = vperm.slane %v1599, 3
    %v1605 = vperm.slane %v1599, 4
    %v1606 = vperm.slane %v1599, 5
    %v1607 = vperm.slane %v1599, 6
    %v1608 = vperm.slane %v1599, 7
    %v1617 = vadd.f32 %v1591, %v1601
    %v1618 = vadd.f32 %v1592, %v1602
    %v1619 = vadd.f32 %v1593, %v1603
    %v1620 = vadd.f32 %v1594, %v1604
    %v1621 = vadd.f32 %v1595, %v1605
    %v1622 = vadd.f32 %v1596, %v1606
    %v1623 = vadd.f32 %v1597, %v1607
    %v1624 = vadd.f32 %v1598, %v1608
    %v1625 = vmax.f32 %v1617, 0.0
    %v1626 = vmax.f32 %v1618, 0.0
    %v1627 = vmax.f32 %v1619, 0.0
    %v1628 = vmax.f32 %v1620, 0.0
    %v1629 = vmax.f32 %v1621, 0.0
    %v1630 = vmax.f32 %v1622, 0.0
    %v1631 = vmax.f32 %v1623, 0.0
    %v1632 = vmax.f32 %v1624, 0.0
    %v1633 = vld [vmem:[%s7] sm:$0xff]
    %v1634 = vld [vmem:[%s7 + $0x8] sm:$0xff]
    %v1635 = vld [vmem:[%s7 + $0x10] sm:$0xff]
    %v1636 = vld [vmem:[%s7 + $0x18] sm:$0xff]
    %v1637 = vld [vmem:[%s7 + $0x20] sm:$0xff]
    %v1638 = vld [vmem:[%s7 + $0x28] sm:$0xff]
    %v1639 = vld [vmem:[%s7 + $0x30] sm:$0xff]
    %v1640 = vld [vmem:[%s7 + $0x38] sm:$0xff]
    %v1641 = vld [vmem:[%s7 + $0x40] sm:$0xff]
    %v1642 = vld [vmem:[%s7 + $0x48] sm:$0xff]
    %v1643 = vld [vmem:[%s7 + $0x50] sm:$0xff]
    %v1644 = vld [vmem:[%s7 + $0x58] sm:$0xff]
    %v1645 = vld [vmem:[%s7 + $0x60] sm:$0xff]
    %v1646 = vld [vmem:[%s7 + $0x68] sm:$0xff]
    %v1647 = vld [vmem:[%s7 + $0x70] sm:$0xff]
    %v1648 = vld [vmem:[%s7 + $0x78] sm:$0xff]
    %v1649 = vld [vmem:[%s7 + $0x80] sm:$0xff]
    %v1650 = vld [vmem:[%s7 + $0x88] sm:$0xff]
    %v1651 = vld [vmem:[%s7 + $0x90] sm:$0xff]
    %v1652 = vld [vmem:[%s7 + $0x98] sm:$0xff]
    %v1653 = vld [vmem:[%s7 + $0xa0] sm:$0xff]
    %v1654 = vld [vmem:[%s7 + $0xa8] sm:$0xff]
    %v1655 = vld [vmem:[%s7 + $0xb0] sm:$0xff]
    %v1656 = vld [vmem:[%s7 + $0xb8] sm:$0xff]
    %v1657 = vld [vmem:[%s7 + $0xc0] sm:$0xff]
    %v1658 = vld [vmem:[%s7 + $0xc8] sm:$0xff]
    %v1659 = vld [vmem:[%s7 + $0xd0] sm:$0xff]
    %v1660 = vld [vmem:[%s7 + $0xd8] sm:$0xff]
    %v1661 = vld [vmem:[%s7 + $0xe0] sm:$0xff]
    %v1662 = vld [vmem:[%s7 + $0xe8] sm:$0xff]
    %v1663 = vld [vmem:[%s7 + $0xf0] sm:$0xff]
    %v1664 = vld [vmem:[%s7 + $0xf8] sm:$0xff]
    %v1665 = vld [vmem:[%s7 + $0x100] sm:$0xff]
    %v1666 = vld [vmem:[%s7 + $0x108] sm:$0xff]
    %v1667 = vld [vmem:[%s7 + $0x110] sm:$0xff]
    %v1668 = vld [vmem:[%s7 + $0x118] sm:$0xff]
    %v1669 = vld [vmem:[%s7 + $0x120] sm:$0xff]
    %v1670 = vld [vmem:[%s7 + $0x128] sm:$0xff]
    %v1671 = vld [vmem:[%s7 + $0x130] sm:$0xff]
    %v1672 = vld [vmem:[%s7 + $0x138] sm:$0xff]
    %v1673 = vld [vmem:[%s7 + $0x140] sm:$0xff]
    %v1674 = vld [vmem:[%s7 + $0x148] sm:$0xff]
    %v1675 = vld [vmem:[%s7 + $0x150] sm:$0xff]
    %v1676 = vld [vmem:[%s7 + $0x158] sm:$0xff]
    %v1677 = vld [vmem:[%s7 + $0x160] sm:$0xff]
    %v1678 = vld [vmem:[%s7 + $0x168] sm:$0xff]
    %v1679 = vld [vmem:[%s7 + $0x170] sm:$0xff]
    %v1680 = vld [vmem:[%s7 + $0x178] sm:$0xff]
    %v1681 = vld [vmem:[%s7 + $0x180] sm:$0xff]
    %v1682 = vld [vmem:[%s7 + $0x188] sm:$0xff]
    %v1683 = vld [vmem:[%s7 + $0x190] sm:$0xff]
    %v1684 = vld [vmem:[%s7 + $0x198] sm:$0xff]
    %v1685 = vld [vmem:[%s7 + $0x1a0] sm:$0xff]
    %v1686 = vld [vmem:[%s7 + $0x1a8] sm:$0xff]
    %v1687 = vld [vmem:[%s7 + $0x1b0] sm:$0xff]
    %v1688 = vld [vmem:[%s7 + $0x1b8] sm:$0xff]
    %v1689 = vld [vmem:[%s7 + $0x1c0] sm:$0xff]
    %v1690 = vld [vmem:[%s7 + $0x1c8] sm:$0xff]
    %v1691 = vld [vmem:[%s7 + $0x1d0] sm:$0xff]
    %v1692 = vld [vmem:[%s7 + $0x1d8] sm:$0xff]
    %v1693 = vld [vmem:[%s7 + $0x1e0] sm:$0xff]
    %v1694 = vld [vmem:[%s7 + $0x1e8] sm:$0xff]
    %v1695 = vld [vmem:[%s7 + $0x1f0] sm:$0xff]
    %v1696 = vld [vmem:[%s7 + $0x1f8] sm:$0xff]
    %v1697 = vld [vmem:[%s7 + $0x200] sm:$0xff]
    %v1698 = vld [vmem:[%s7 + $0x208] sm:$0xff]
    %v1699 = vld [vmem:[%s7 + $0x210] sm:$0xff]
    %v1700 = vld [vmem:[%s7 + $0x218] sm:$0xff]
    %v1701 = vld [vmem:[%s7 + $0x220] sm:$0xff]
    %v1702 = vld [vmem:[%s7 + $0x228] sm:$0xff]
    %v1703 = vld [vmem:[%s7 + $0x230] sm:$0xff]
    %v1704 = vld [vmem:[%s7 + $0x238] sm:$0xff]
    %v1705 = vld [vmem:[%s7 + $0x240] sm:$0xff]
    %v1706 = vld [vmem:[%s7 + $0x248] sm:$0xff]
    %v1707 = vld [vmem:[%s7 + $0x250] sm:$0xff]
    %v1708 = vld [vmem:[%s7 + $0x258] sm:$0xff]
    %v1709 = vld [vmem:[%s7 + $0x260] sm:$0xff]
    %v1710 = vld [vmem:[%s7 + $0x268] sm:$0xff]
    %v1711 = vld [vmem:[%s7 + $0x270] sm:$0xff]
    %v1712 = vld [vmem:[%s7 + $0x278] sm:$0xff]
    %v1713 = vld [vmem:[%s7 + $0x280] sm:$0xff]
    %v1714 = vld [vmem:[%s7 + $0x288] sm:$0xff]
    %v1715 = vld [vmem:[%s7 + $0x290] sm:$0xff]
    %v1716 = vld [vmem:[%s7 + $0x298] sm:$0xff]
    %v1717 = vld [vmem:[%s7 + $0x2a0] sm:$0xff]
    %v1718 = vld [vmem:[%s7 + $0x2a8] sm:$0xff]
    %v1719 = vld [vmem:[%s7 + $0x2b0] sm:$0xff]
    %v1720 = vld [vmem:[%s7 + $0x2b8] sm:$0xff]
    %v1721 = vld [vmem:[%s7 + $0x2c0] sm:$0xff]
    %v1722 = vld [vmem:[%s7 + $0x2c8] sm:$0xff]
    %v1723 = vld [vmem:[%s7 + $0x2d0] sm:$0xff]
    %v1724 = vld [vmem:[%s7 + $0x2d8] sm:$0xff]
    %v1725 = vld [vmem:[%s7 + $0x2e0] sm:$0xff]
    %v1726 = vld [vmem:[%s7 + $0x2e8] sm:$0xff]
    %v1727 = vld [vmem:[%s7 + $0x2f0] sm:$0xff]
    %v1728 = vld [vmem:[%s7 + $0x2f8] sm:$0xff]
    %v1729 = vld [vmem:[%s7 + $0x300] sm:$0xff]
    %v1730 = vld [vmem:[%s7 + $0x308] sm:$0xff]
    %v1731 = vld [vmem:[%s7 + $0x310] sm:$0xff]
    %v1732 = vld [vmem:[%s7 + $0x318] sm:$0xff]
    %v1733 = vld [vmem:[%s7 + $0x320] sm:$0xff]
    %v1734 = vld [vmem:[%s7 + $0x328] sm:$0xff]
    %v1735 = vld [vmem:[%s7 + $0x330] sm:$0xff]
    %v1736 = vld [vmem:[%s7 + $0x338] sm:$0xff]
    %v1737 = vld [vmem:[%s7 + $0x340] sm:$0xff]
    %v1738 = vld [vmem:[%s7 + $0x348] sm:$0xff]
    %v1739 = vld [vmem:[%s7 + $0x350] sm:$0xff]
    %v1740 = vld [vmem:[%s7 + $0x358] sm:$0xff]
    %v1741 = vld [vmem:[%s7 + $0x360] sm:$0xff]
    %v1742 = vld [vmem:[%s7 + $0x368] sm:$0xff]
    %v1743 = vld [vmem:[%s7 + $0x370] sm:$0xff]
    %v1744 = vld [vmem:[%s7 + $0x378] sm:$0xff]
    %v1745 = vld [vmem:[%s7 + $0x380] sm:$0xff]
    %v1746 = vld [vmem:[%s7 + $0x388] sm:$0xff]
    %v1747 = vld [vmem:[%s7 + $0x390] sm:$0xff]
    %v1748 = vld [vmem:[%s7 + $0x398] sm:$0xff]
    %v1749 = vld [vmem:[%s7 + $0x3a0] sm:$0xff]
    %v1750 = vld [vmem:[%s7 + $0x3a8] sm:$0xff]
    %v1751 = vld [vmem:[%s7 + $0x3b0] sm:$0xff]
    %v1752 = vld [vmem:[%s7 + $0x3b8] sm:$0xff]
    %v1753 = vld [vmem:[#allocation14] sm:$0x1]
    %v1755 = vperm.slane %v1753, 0
    %vm1757 = vcmask 523264
    %v1759 = vsel %vm1757, %v1632, 0
    %1761 = vmatpush.msra.mxu0 %v1648
    %1762 = vmatpush.msra.mxu0 %v1647
    %1763 = vmatpush.msra.mxu0 %v1646
    %1764 = vmatpush.msra.mxu0 %v1645
    %1765 = vmatpush.msra.mxu0 %v1644
    %1766 = vmatpush.msra.mxu0 %v1643
    %1767 = vmatpush.msra.mxu0 %v1642
    %1768 = vmatpush.msra.mxu0 %v1641
    %1769 = vmatpush.msra.mxu0 %v1640
    %1770 = vmatpush.msra.mxu0 %v1639
    %1771 = vmatpush.msra.mxu0 %v1638
    %1772 = vmatpush.msra.mxu0 %v1637
    %1773 = vmatpush.msra.mxu0 %v1636
    %1774 = vmatpush.msra.mxu0 %v1635
    %1775 = vmatpush.msra.mxu0 %v1634
    %1776 = vmatpush.msra.mxu0 %v1633
    %1777 = vmatmul.f32.gmra.mxu0 %v1625
    %v1778 = vpop.f32.mrf.mxu0
    %v1779 = vadd.f32 %v1755, %v1778
    %1780 = vdwg.mxu0
    %1781 = vmatpush.msra.mxu0 %v1664
    %1782 = vmatpush.msra.mxu0 %v1663
    %1783 = vmatpush.msra.mxu0 %v1662
    %1784 = vmatpush.msra.mxu0 %v1661
    %1785 = vmatpush.msra.mxu0 %v1660
    %1786 = vmatpush.msra.mxu0 %v1659
    %1787 = vmatpush.msra.mxu0 %v1658
    %1788 = vmatpush.msra.mxu0 %v1657
    %1789 = vmatpush.msra.mxu0 %v1656
    %1790 = vmatpush.msra.mxu0 %v1655
    %1791 = vmatpush.msra.mxu0 %v1654
    %1792 = vmatpush.msra.mxu0 %v1653
    %1793 = vmatpush.msra.mxu0 %v1652
    %1794 = vmatpush.msra.mxu0 %v1651
    %1795 = vmatpush.msra.mxu0 %v1650
    %1796 = vmatpush.msra.mxu0 %v1649
    %1797 = vmatmul.f32.gmra.mxu0 %v1626
    %v1798 = vpop.f32.mrf.mxu0
    %v1799 = vadd.f32 %v1779, %v1798
    %1800 = vdwg.mxu0
    %1801 = vmatpush.msra.mxu0 %v1680
    %1802 = vmatpush.msra.mxu0 %v1679
    %1803 = vmatpush.msra.mxu0 %v1678
    %1804 = vmatpush.msra.mxu0 %v1677
    %1805 = vmatpush.msra.mxu0 %v1676
    %1806 = vmatpush.msra.mxu0 %v1675
    %1807 = vmatpush.msra.mxu0 %v1674
    %1808 = vmatpush.msra.mxu0 %v1673
    %1809 = vmatpush.msra.mxu0 %v1672
    %1810 = vmatpush.msra.mxu0 %v1671
    %1811 = vmatpush.msra.mxu0 %v1670
    %1812 = vmatpush.msra.mxu0 %v1669
    %1813 = vmatpush.msra.mxu0 %v1668
    %1814 = vmatpush.msra.mxu0 %v1667
    %1815 = vmatpush.msra.mxu0 %v1666
    %1816 = vmatpush.msra.mxu0 %v1665
    %1817 = vmatmul.f32.gmra.mxu0 %v1627
    %v1818 = vpop.f32.mrf.mxu0
    %v1819 = vadd.f32 %v1799, %v1818
    %1820 = vdwg.mxu0
    %1821 = vmatpush.msra.mxu0 %v1696
    %1822 = vmatpush.msra.mxu0 %v1695
    %1823 = vmatpush.msra.mxu0 %v1694
    %1824 = vmatpush.msra.mxu0 %v1693
    %1825 = vmatpush.msra.mxu0 %v1692
    %1826 = vmatpush.msra.mxu0 %v1691
    %1827 = vmatpush.msra.mxu0 %v1690
    %1828 = vmatpush.msra.mxu0 %v1689
    %1829 = vmatpush.msra.mxu0 %v1688
    %1830 = vmatpush.msra.mxu0 %v1687
    %1831 = vmatpush.msra.mxu0 %v1686
    %1832 = vmatpush.msra.mxu0 %v1685
    %1833 = vmatpush.msra.mxu0 %v1684
    %1834 = vmatpush.msra.mxu0 %v1683
    %1835 = vmatpush.msra.mxu0 %v1682
    %1836 = vmatpush.msra.mxu0 %v1681
    %1837 = vmatmul.f32.gmra.mxu0 %v1628
    %v1838 = vpop.f32.mrf.mxu0
    %v1839 = vadd.f32 %v1819, %v1838
    %1840 = vdwg.mxu0
    %1841 = vmatpush.msra.mxu0 %v1712
    %1842 = vmatpush.msra.mxu0 %v1711
    %1843 = vmatpush.msra.mxu0 %v1710
    %1844 = vmatpush.msra.mxu0 %v1709
    %1845 = vmatpush.msra.mxu0 %v1708
    %1846 = vmatpush.msra.mxu0 %v1707
    %1847 = vmatpush.msra.mxu0 %v1706
    %1848 = vmatpush.msra.mxu0 %v1705
    %1849 = vmatpush.msra.mxu0 %v1704
    %1850 = vmatpush.msra.mxu0 %v1703
    %1851 = vmatpush.msra.mxu0 %v1702
    %1852 = vmatpush.msra.mxu0 %v1701
    %1853 = vmatpush.msra.mxu0 %v1700
    %1854 = vmatpush.msra.mxu0 %v1699
    %1855 = vmatpush.msra.mxu0 %v1698
    %1856 = vmatpush.msra.mxu0 %v1697
    %1857 = vmatmul.f32.gmra.mxu0 %v1629
    %v1858 = vpop.f32.mrf.mxu0
    %v1859 = vadd.f32 %v1839, %v1858
    %1860 = vdwg.mxu0
    %1861 = vmatpush.msra.mxu0 %v1728
    %1862 = vmatpush.msra.mxu0 %v1727
    %1863 = vmatpush.msra.mxu0 %v1726
    %1864 = vmatpush.msra.mxu0 %v1725
    %1865 = vmatpush.msra.mxu0 %v1724
    %1866 = vmatpush.msra.mxu0 %v1723
    %1867 = vmatpush.msra.mxu0 %v1722
    %1868 = vmatpush.msra.mxu0 %v1721
    %1869 = vmatpush.msra.mxu0 %v1720
    %1870 = vmatpush.msra.mxu0 %v1719
    %1871 = vmatpush.msra.mxu0 %v1718
    %1872 = vmatpush.msra.mxu0 %v1717
    %1873 = vmatpush.msra.mxu0 %v1716
    %1874 = vmatpush.msra.mxu0 %v1715
    %1875 = vmatpush.msra.mxu0 %v1714
    %1876 = vmatpush.msra.mxu0 %v1713
    %1877 = vmatmul.f32.gmra.mxu0 %v1630
    %v1878 = vpop.f32.mrf.mxu0
    %v1879 = vadd.f32 %v1859, %v1878
    %1880 = vdwg.mxu0
    %1881 = vmatpush.msra.mxu0 %v1744
    %1882 = vmatpush.msra.mxu0 %v1743
    %1883 = vmatpush.msra.mxu0 %v1742
    %1884 = vmatpush.msra.mxu0 %v1741
    %1885 = vmatpush.msra.mxu0 %v1740
    %1886 = vmatpush.msra.mxu0 %v1739
    %1887 = vmatpush.msra.mxu0 %v1738
    %1888 = vmatpush.msra.mxu0 %v1737
    %1889 = vmatpush.msra.mxu0 %v1736
    %1890 = vmatpush.msra.mxu0 %v1735
    %1891 = vmatpush.msra.mxu0 %v1734
    %1892 = vmatpush.msra.mxu0 %v1733
    %1893 = vmatpush.msra.mxu0 %v1732
    %1894 = vmatpush.msra.mxu0 %v1731
    %1895 = vmatpush.msra.mxu0 %v1730
    %1896 = vmatpush.msra.mxu0 %v1729
    %1897 = vmatmul.f32.gmra.mxu0 %v1631
    %v1898 = vpop.f32.mrf.mxu0
    %v1899 = vadd.f32 %v1879, %v1898
    %1900 = vdwg.mxu0
    %1901 = vmatpush.msra.mxu0 0.0
    %1902 = vmatpush.msra.mxu0 0.0
    %1903 = vmatpush.msra.mxu0 0.0
    %1904 = vmatpush.msra.mxu0 0.0
    %1905 = vmatpush.msra.mxu0 0.0
    %1906 = vmatpush.msra.mxu0 0.0
    %1907 = vmatpush.msra.mxu0 0.0
    %1908 = vmatpush.msra.mxu0 0.0
    %1909 = vmatpush.msra.mxu0 %v1752
    %1910 = vmatpush.msra.mxu0 %v1751
    %1911 = vmatpush.msra.mxu0 %v1750
    %1912 = vmatpush.msra.mxu0 %v1749
    %1913 = vmatpush.msra.mxu0 %v1748
    %1914 = vmatpush.msra.mxu0 %v1747
    %1915 = vmatpush.msra.mxu0 %v1746
    %1916 = vmatpush.msra.mxu0 %v1745
    %1917 = vmatmul.f32.gmra.mxu0 %v1759
    %v1918 = vpop.f32.mrf.mxu0
    %v1919 = vadd.f32 %v1899, %v1918
    %1920 = vdwg.mxu0
    %vm1921 = vcmask 64512
    %1922 = vst.msk [vmem:[#allocation16] sm:$0xff] %vm1921, %v1919
    // Predicated region
    $region70: #{tpu_custom_call.1} parent=1 // pred_check
      _
    $region71: #{tpu_custom_call.1} parent=1 // pred_check_branch
      %1924 = sbr.rel (0) target = $region73
    $region72: #{tpu_custom_call.1} parent=1 // pred_region
      %1926 = vsyncadd [#allocation4], 0
      %s1928 = sshll.u32 [#allocation16], 4
      %s1929 = int_to_ptr.vmem [resolvable:$true] %s1928
      %s1930 = sshll.u32 %s9, 4
      %s1931 = int_to_ptr.hbm [resolvable:$true] %s1930
      %1933 = dma.vmem_to_hbm [thread:$0]  %s1929, 128, %s1931, [#allocation4]
    $region73: #{tpu_custom_call.1} parent=1 // pred_fallthru
      _
    // Predicated region
    $region74: #{tpu_custom_call.1} parent=1 // pred_check
      _
    $region75: #{tpu_custom_call.1} parent=1 // pred_check_branch
      %1935 = sbr.rel (0) target = $region77
    $region76: #{tpu_custom_call.1} parent=1 // pred_region
      %1937 = dma.done [#allocation4], 128
    $region77: #{tpu_custom_call.1} parent=1 // pred_fallthru
      _
    %1938 = vsyncpa [#allocation3], 1
    %1939 = vsyncpa [#allocation6], 1
    %1940 = vsyncpa [#allocation9], 1
    %1941 = vsyncpa [#allocation12], 1
    %1942 = vsyncpa [#allocation15], 1
    %1943 = vsyncpa [#allocation4], 1

</llo_original>
